<compile_context>
chip_gen: v7x
topology: tpu7x:2x2x1
jax: 0.10.0
libtpu: 0.0.40
codegen_flags: <defaults>
</compile_context>

<pallas_src>
import math
import functools

import jax
import jax.numpy as jnp
import numpy as np
from jax.experimental import pallas as pl
from jax.experimental.pallas import tpu as pltpu


def _perceiver_compress_kernel(lat_ref, kv_ref, wq_ref, wk_ref, wv_ref, wo_ref,
                               bo_ref, gq_ref, bq_ref, gkv_ref, bkv_ref,
                               o_ref, qn_s, kvn_s, acc_s,
                               *, num_heads: int, head_dim: int, eps: float):
    h = pl.program_id(1)                     # head index (reduction axis)
    bt, t_kv, dim = kv_ref.shape             # batch block, kv length, embed dim
    t_q = lat_ref.shape[0]                   # number of latents

    # ---- once per batch block (h == 0): LayerNorms cached in VMEM, acc zeroed
    @pl.when(h == 0)
    def _init():
        def layer_norm(x, g, b):
            mu = jnp.mean(x, axis=-1, keepdims=True)
            var = jnp.mean(x * x, axis=-1, keepdims=True) - mu * mu  # one-pass
            return (x - mu) * jax.lax.rsqrt(var + eps) * g + b

        xq = lat_ref[...].astype(jnp.float32)                          # (Tq, D)
        xkv = kv_ref[...].reshape(bt * t_kv, dim).astype(jnp.float32)  # (Bt*Tkv, D)
        qn_s[...] = layer_norm(xq, gq_ref[...], bq_ref[...])
        kvn_s[...] = layer_norm(xkv, gkv_ref[...], bkv_ref[...])
        acc_s[...] = jnp.zeros_like(acc_s)

    # ---- this head's projections (weights pre-sliced/pre-transposed host-side)
    wq = wq_ref[0]                      # (D, hd)
    wk = wk_ref[0]                      # (D, hd)
    wv = wv_ref[0]                      # (D, hd)
    wo = wo_ref[0]                      # (hd, D)

    q_h = jnp.dot(qn_s[...], wq, preferred_element_type=jnp.float32)   # (Tq, hd) shared
    k_h = jnp.dot(kvn_s[...], wk, preferred_element_type=jnp.float32)  # (Bt*Tkv, hd)
    v_h = jnp.dot(kvn_s[...], wv, preferred_element_type=jnp.float32)  # (Bt*Tkv, hd)

    k_h = k_h.reshape(bt, t_kv, head_dim)                    # leading-dim split only
    v_h = v_h.reshape(bt, t_kv, head_dim)
    q_b = jnp.broadcast_to(q_h[None], (bt, t_q, head_dim))   # latent shared over batch

    scale = 1.0 / math.sqrt(head_dim)
    s = jnp.einsum('bqd,bkd->bqk', q_b, k_h,
                   preferred_element_type=jnp.float32) * scale          # (Bt, Tq, Tkv)
    s = s - jnp.max(s, axis=-1, keepdims=True)
    p = jnp.exp(s)
    denom = jnp.sum(p, axis=-1, keepdims=True)                           # (Bt, Tq, 1)
    o = jnp.einsum('bqk,bkd->bqd', p, v_h,
                   preferred_element_type=jnp.float32)                   # (Bt, Tq, hd)
    o = o * pl.reciprocal(denom, approx=False)      # normalize after PV (smaller tensor)

    # out-projection contribution of this head, accumulated over the head grid axis
    acc_s[...] += jnp.dot(o.reshape(bt * t_q, head_dim), wo,
                          preferred_element_type=jnp.float32)            # (Bt*Tq, D)

    # ---- last head: add bias + residual (un-normalized latent query) and store
    @pl.when(h == num_heads - 1)
    def _finalize():
        out = acc_s[...].reshape(bt, t_q, dim) + bo_ref[...]
        out = out + jnp.broadcast_to(lat_ref[...].astype(jnp.float32)[None],
                                     (bt, t_q, dim))
        o_ref[...] = out.astype(o_ref.dtype)


def perceiver_io_compress(x, latent_query, params, *, num_heads: int,
                          batch_block=None, eps: float = 1e-5):
    """x: (B, Tkv, D); latent_query: (1, num_latents, D) torch-style parameter."""
    B, t_kv, D = x.shape
    latent = latent_query.reshape(-1, D)            # (Tq, D), shared across batch
    t_q = latent.shape[0]
    head_dim = D // num_heads
    assert head_dim * num_heads == D

    if t_kv == 0:   # mirror the torch early-return: query passthrough
        return jnp.broadcast_to(latent[None], (B, t_q, D)).astype(x.dtype)

    wq, wk, wv, wo, bo, gq, bq, gkv, bkv = params
    # Host-side (free) weight re-layout: per-head slabs, already transposed so the
    # kernel never transposes on-chip.  torch Linear stores (out, in); heads are
    # contiguous along the out (q/k/v) or in (out_proj) axis.
    wq_h = wq.reshape(num_heads, head_dim, D).transpose(0, 2, 1)   # (H, D, hd)
    wk_h = wk.reshape(num_heads, head_dim, D).transpose(0, 2, 1)   # (H, D, hd)
    wv_h = wv.reshape(num_heads, head_dim, D).transpose(0, 2, 1)   # (H, D, hd)
    wo_h = wo.T.reshape(num_heads, head_dim, D)                    # (H, hd, D)
    bo2, gq2, bq2, gkv2, bkv2 = (v.reshape(1, D) for v in (bo, gq, bq, gkv, bkv))

    # Fold the whole batch into one block by default (raises matmul M, kills
    # per-step overhead on single-TC v5e/v6e).  On v7x, pass batch_block=B//2 so
    # the "parallel" batch axis feeds both TensorCores.
    bt = B if batch_block is None else batch_block
    assert B % bt == 0
    b_grid = B // bt

    kernel = functools.partial(_perceiver_compress_kernel,
                               num_heads=num_heads, head_dim=head_dim, eps=eps)

    const2d = lambda b, h: (0, 0)
    head3d = lambda b, h: (h, 0, 0)

    flops = 2 * D * D * (t_q + 2 * B * t_kv + B * t_q) + 4 * B * t_q * t_kv * D
    cost = pl.CostEstimate(
        flops=flops,
        transcendentals=B * num_heads * t_q * t_kv + t_q + B * t_kv,
        bytes_accessed=4 * (B * t_kv * D + 2 * B * t_q * D + t_q * D
                            + 4 * D * D + 5 * D),
    )

    return pl.pallas_call(
        kernel,
        out_shape=jax.ShapeDtypeStruct((B, t_q, D), x.dtype),
        grid=(b_grid, num_heads),
        in_specs=[
            pl.BlockSpec((t_q, D), const2d),                      # latent query
            pl.BlockSpec((bt, t_kv, D), lambda b, h: (b, 0, 0)),  # x (kv)
            pl.BlockSpec((1, D, head_dim), head3d),               # wq (per head)
            pl.BlockSpec((1, D, head_dim), head3d),               # wk (per head)
            pl.BlockSpec((1, D, head_dim), head3d),               # wv (per head)
            pl.BlockSpec((1, head_dim, D), head3d),               # wo (per head)
            pl.BlockSpec((1, D), const2d),                        # out-proj bias
            pl.BlockSpec((1, D), const2d),                        # norm_q gamma
            pl.BlockSpec((1, D), const2d),                        # norm_q beta
            pl.BlockSpec((1, D), const2d),                        # norm_kv gamma
            pl.BlockSpec((1, D), const2d),                        # norm_kv beta
        ],
        out_specs=pl.BlockSpec((bt, t_q, D), lambda b, h: (b, 0, 0)),
        scratch_shapes=[
            pltpu.VMEM((t_q, D), jnp.float32),         # cached LayerNorm'd latent
            pltpu.VMEM((bt * t_kv, D), jnp.float32),   # cached LayerNorm'd kv
            pltpu.VMEM((bt * t_q, D), jnp.float32),    # out-proj accumulator
        ],
        compiler_params=pltpu.CompilerParams(
            dimension_semantics=("parallel", "arbitrary"),
            vmem_limit_bytes=32 * 1024 * 1024,
        ),
        cost_estimate=cost,
    )(latent, x, wq_h, wk_h, wv_h, wo_h, bo2, gq2, bq2, gkv2, bkv2)


def _reference(x, latent_query, params, *, num_heads: int):
    """Pure-JAX reference matching the PyTorch module (eval mode)."""
    wq, wk, wv, wo, bo, gq, bq, gkv, bkv = params
    B, t_kv, D = x.shape
    latent = latent_query.reshape(-1, D)
    t_q = latent.shape[0]
    hd = D // num_heads
    query = jnp.broadcast_to(latent[None], (B, t_q, D))

    def ln(t, g, b):
        mu = t.mean(-1, keepdims=True)
        var = ((t - mu) ** 2).mean(-1, keepdims=True)
        return (t - mu) / jnp.sqrt(var + 1e-5) * g + b

    qn, kvn = ln(query, gq, bq), ln(x, gkv, bkv)
    q = (qn @ wq.T).reshape(B, t_q, num_heads, hd).transpose(0, 2, 1, 3)
    k = (kvn @ wk.T).reshape(B, t_kv, num_heads, hd).transpose(0, 2, 1, 3)
    v = (kvn @ wv.T).reshape(B, t_kv, num_heads, hd).transpose(0, 2, 1, 3)
    s = jnp.einsum('bhqd,bhkd->bhqk', q, k) / math.sqrt(hd)
    p = jax.nn.softmax(s, axis=-1)
    o = jnp.einsum('bhqk,bhkd->bhqd', p, v).transpose(0, 2, 1, 3).reshape(B, t_q, D)
    return query + (o @ wo.T + bo)


if __name__ == "__main__":
    # B=2, seq=16, hidden=32, num_latents=8, heads=4 (head_dim=8)
    B, Tkv, Tq, D, H = 2, 16, 8, 32, 4

    key = jax.random.PRNGKey(0)
    ks = jax.random.split(key, 11)
    x = jax.random.normal(ks[0], (B, Tkv, D), dtype=jnp.float32)
    latent_query = jax.random.normal(ks[1], (1, Tq, D), dtype=jnp.float32)

    # deterministic parameters (shapes match nn.LayerNorm(D) / nn.Linear(D, D))
    wq = 0.05 * jax.random.normal(ks[2], (D, D), dtype=jnp.float32)
    wk = 0.05 * jax.random.normal(ks[3], (D, D), dtype=jnp.float32)
    wv = 0.05 * jax.random.normal(ks[4], (D, D), dtype=jnp.float32)
    wo = 0.05 * jax.random.normal(ks[5], (D, D), dtype=jnp.float32)
    bo = 0.01 * jax.random.normal(ks[6], (D,), dtype=jnp.float32)
    gq = 1.0 + 0.1 * jax.random.normal(ks[7], (D,), dtype=jnp.float32)
    bq = 0.05 * jax.random.normal(ks[8], (D,), dtype=jnp.float32)
    gkv = 1.0 + 0.1 * jax.random.normal(ks[9], (D,), dtype=jnp.float32)
    bkv = 0.05 * jax.random.normal(ks[10], (D,), dtype=jnp.float32)
    params = (wq, wk, wv, wo, bo, gq, bq, gkv, bkv)

    out = perceiver_io_compress(x, latent_query, params, num_heads=H)
    out = jax.block_until_ready(out)

    ref = _reference(x, latent_query, params, num_heads=H)
    np.testing.assert_allclose(np.asarray(out), np.asarray(ref),
                               rtol=2e-5, atol=2e-5)

    print("KERNEL_OK")
</pallas_src>

<mosaic_0001>
module attributes {stable_mosaic.version = 11 : i64} {
  func.func @_perceiver_compress_kernel(%arg0: i32, %arg1: i32, %arg2: memref<8x32xf32, #tpu.memory_space<vmem>>, %arg3: memref<2x16x32xf32, #tpu.memory_space<vmem>>, %arg4: memref<1x32x8xf32, #tpu.memory_space<vmem>>, %arg5: memref<1x32x8xf32, #tpu.memory_space<vmem>>, %arg6: memref<1x32x8xf32, #tpu.memory_space<vmem>>, %arg7: memref<1x8x32xf32, #tpu.memory_space<vmem>>, %arg8: memref<1x32xf32, #tpu.memory_space<vmem>>, %arg9: memref<1x32xf32, #tpu.memory_space<vmem>>, %arg10: memref<1x32xf32, #tpu.memory_space<vmem>>, %arg11: memref<1x32xf32, #tpu.memory_space<vmem>>, %arg12: memref<1x32xf32, #tpu.memory_space<vmem>>, %arg13: memref<2x8x32xf32, #tpu.memory_space<vmem>>, %arg14: memref<8x32xf32, #tpu.memory_space<vmem>>, %arg15: memref<32x32xf32, #tpu.memory_space<vmem>>, %arg16: memref<16x32xf32, #tpu.memory_space<vmem>>) attributes {dimension_semantics = [#tpu.dimension_semantics<parallel>, #tpu.dimension_semantics<arbitrary>], iteration_bounds = array<i64: 1, 4>, scalar_prefetch = 0 : i64, scratch_operands = 3 : i64, tpu.core_type = #tpu.core_type<tc>, window_params = [{pipeline_mode = #tpu.pipeline_mode<synchronous>, transform_indices = @transform_0, window_bounds = array<i64: 8, 32>}, {transform_indices = @transform_1, window_bounds = array<i64: 2, 16, 32>}, {transform_indices = @transform_2, window_bounds = array<i64: 1, 32, 8>}, {transform_indices = @transform_3, window_bounds = array<i64: 1, 32, 8>}, {transform_indices = @transform_4, window_bounds = array<i64: 1, 32, 8>}, {transform_indices = @transform_5, window_bounds = array<i64: 1, 8, 32>}, {pipeline_mode = #tpu.pipeline_mode<synchronous>, transform_indices = @transform_6, window_bounds = array<i64: 1, 32>}, {pipeline_mode = #tpu.pipeline_mode<synchronous>, transform_indices = @transform_7, window_bounds = array<i64: 1, 32>}, {pipeline_mode = #tpu.pipeline_mode<synchronous>, transform_indices = @transform_8, window_bounds = array<i64: 1, 32>}, {pipeline_mode = #tpu.pipeline_mode<synchronous>, transform_indices = @transform_9, window_bounds = array<i64: 1, 32>}, {pipeline_mode = #tpu.pipeline_mode<synchronous>, transform_indices = @transform_10, window_bounds = array<i64: 1, 32>}, {transform_indices = @transform_11, window_bounds = array<i64: 2, 8, 32>}]} {
    %c0_i32 = arith.constant 0 : i32
    %0 = arith.cmpi eq, %arg1, %c0_i32 : i32
    %1 = arith.extui %0 : i1 to i32
    %c0_i32_0 = arith.constant 0 : i32
    %2 = arith.cmpi ne, %1, %c0_i32_0 : i32
    scf.if %2 {
      %c0_31 = arith.constant 0 : index
      %c0_32 = arith.constant 0 : index
      %44 = vector.load %arg2[%c0_31, %c0_32] : memref<8x32xf32, #tpu.memory_space<vmem>>, vector<8x32xf32>
      %c0_33 = arith.constant 0 : index
      %c0_34 = arith.constant 0 : index
      %c0_35 = arith.constant 0 : index
      %45 = vector.load %arg3[%c0_33, %c0_34, %c0_35] : memref<2x16x32xf32, #tpu.memory_space<vmem>>, vector<2x16x32xf32>
      %46 = vector.shape_cast %45 : vector<2x16x32xf32> to vector<32x32xf32>
      %c0_36 = arith.constant 0 : index
      %c0_37 = arith.constant 0 : index
      %47 = vector.load %arg9[%c0_36, %c0_37] : memref<1x32xf32, #tpu.memory_space<vmem>>, vector<1x32xf32>
      %c0_38 = arith.constant 0 : index
      %c0_39 = arith.constant 0 : index
      %48 = vector.load %arg10[%c0_38, %c0_39] : memref<1x32xf32, #tpu.memory_space<vmem>>, vector<1x32xf32>
      %cst_40 = arith.constant dense<0.000000e+00> : vector<8xf32>
      %49 = vector.multi_reduction <add>, %44, %cst_40 [1] : vector<8x32xf32> to vector<8xf32>
      %50 = vector.shape_cast %49 : vector<8xf32> to vector<8x1xf32>
      %cst_41 = arith.constant 3.200000e+01 : f32
      %51 = vector.broadcast %cst_41 : f32 to vector<8x1xf32>
      %52 = arith.divf %50, %51 : vector<8x1xf32>
      %53 = arith.mulf %44, %44 : vector<8x32xf32>
      %cst_42 = arith.constant dense<0.000000e+00> : vector<8xf32>
      %54 = vector.multi_reduction <add>, %53, %cst_42 [1] : vector<8x32xf32> to vector<8xf32>
      %55 = vector.shape_cast %54 : vector<8xf32> to vector<8x1xf32>
      %cst_43 = arith.constant 3.200000e+01 : f32
      %56 = vector.broadcast %cst_43 : f32 to vector<8x1xf32>
      %57 = arith.divf %55, %56 : vector<8x1xf32>
      %58 = arith.mulf %52, %52 : vector<8x1xf32>
      %59 = arith.subf %57, %58 : vector<8x1xf32>
      %60 = vector.broadcast %52 : vector<8x1xf32> to vector<8x32xf32>
      %61 = arith.subf %44, %60 : vector<8x32xf32>
      %cst_44 = arith.constant 9.99999974E-6 : f32
      %62 = vector.broadcast %cst_44 : f32 to vector<8x1xf32>
      %63 = arith.addf %59, %62 : vector<8x1xf32>
      %64 = math.rsqrt %63 : vector<8x1xf32>
      %65 = vector.broadcast %64 : vector<8x1xf32> to vector<8x32xf32>
      %66 = arith.mulf %61, %65 : vector<8x32xf32>
      %67 = vector.broadcast %47 : vector<1x32xf32> to vector<8x32xf32>
      %68 = arith.mulf %66, %67 : vector<8x32xf32>
      %69 = vector.broadcast %48 : vector<1x32xf32> to vector<8x32xf32>
      %70 = arith.addf %68, %69 : vector<8x32xf32>
      %c0_45 = arith.constant 0 : index
      %c0_46 = arith.constant 0 : index
      %71 = vector.load %arg14[%c0_45, %c0_46] : memref<8x32xf32, #tpu.memory_space<vmem>>, vector<8x32xf32>
      tpu.vector_store %arg14[%c0_45, %c0_46], %70 {strides = array<i32>} : memref<8x32xf32, #tpu.memory_space<vmem>>, vector<8x32xf32>,
      %c0_47 = arith.constant 0 : index
      %c0_48 = arith.constant 0 : index
      %72 = vector.load %arg11[%c0_47, %c0_48] : memref<1x32xf32, #tpu.memory_space<vmem>>, vector<1x32xf32>
      %c0_49 = arith.constant 0 : index
      %c0_50 = arith.constant 0 : index
      %73 = vector.load %arg12[%c0_49, %c0_50] : memref<1x32xf32, #tpu.memory_space<vmem>>, vector<1x32xf32>
      %cst_51 = arith.constant dense<0.000000e+00> : vector<32xf32>
      %74 = vector.multi_reduction <add>, %46, %cst_51 [1] : vector<32x32xf32> to vector<32xf32>
      %75 = vector.shape_cast %74 : vector<32xf32> to vector<32x1xf32>
      %cst_52 = arith.constant 3.200000e+01 : f32
      %76 = vector.broadcast %cst_52 : f32 to vector<32x1xf32>
      %77 = arith.divf %75, %76 : vector<32x1xf32>
      %78 = arith.mulf %46, %46 : vector<32x32xf32>
      %cst_53 = arith.constant dense<0.000000e+00> : vector<32xf32>
      %79 = vector.multi_reduction <add>, %78, %cst_53 [1] : vector<32x32xf32> to vector<32xf32>
      %80 = vector.shape_cast %79 : vector<32xf32> to vector<32x1xf32>
      %cst_54 = arith.constant 3.200000e+01 : f32
      %81 = vector.broadcast %cst_54 : f32 to vector<32x1xf32>
      %82 = arith.divf %80, %81 : vector<32x1xf32>
      %83 = arith.mulf %77, %77 : vector<32x1xf32>
      %84 = arith.subf %82, %83 : vector<32x1xf32>
      %85 = vector.broadcast %77 : vector<32x1xf32> to vector<32x32xf32>
      %86 = arith.subf %46, %85 : vector<32x32xf32>
      %cst_55 = arith.constant 9.99999974E-6 : f32
      %87 = vector.broadcast %cst_55 : f32 to vector<32x1xf32>
      %88 = arith.addf %84, %87 : vector<32x1xf32>
      %89 = math.rsqrt %88 : vector<32x1xf32>
      %90 = vector.broadcast %89 : vector<32x1xf32> to vector<32x32xf32>
      %91 = arith.mulf %86, %90 : vector<32x32xf32>
      %92 = vector.broadcast %72 : vector<1x32xf32> to vector<32x32xf32>
      %93 = arith.mulf %91, %92 : vector<32x32xf32>
      %94 = vector.broadcast %73 : vector<1x32xf32> to vector<32x32xf32>
      %95 = arith.addf %93, %94 : vector<32x32xf32>
      %c0_56 = arith.constant 0 : index
      %c0_57 = arith.constant 0 : index
      %96 = vector.load %arg15[%c0_56, %c0_57] : memref<32x32xf32, #tpu.memory_space<vmem>>, vector<32x32xf32>
      tpu.vector_store %arg15[%c0_56, %c0_57], %95 {strides = array<i32>} : memref<32x32xf32, #tpu.memory_space<vmem>>, vector<32x32xf32>,
      %cst_58 = arith.constant 0.000000e+00 : f32
      %97 = vector.broadcast %cst_58 : f32 to vector<16x32xf32>
      %c0_59 = arith.constant 0 : index
      %c0_60 = arith.constant 0 : index
      %98 = vector.load %arg16[%c0_59, %c0_60] : memref<16x32xf32, #tpu.memory_space<vmem>>, vector<16x32xf32>
      tpu.vector_store %arg16[%c0_59, %c0_60], %97 {strides = array<i32>} : memref<16x32xf32, #tpu.memory_space<vmem>>, vector<16x32xf32>,
    } else {
    }
    %c0 = arith.constant 0 : index
    %c0_1 = arith.constant 0 : index
    %c0_2 = arith.constant 0 : index
    %3 = vector.load %arg4[%c0, %c0_1, %c0_2] : memref<1x32x8xf32, #tpu.memory_space<vmem>>, vector<1x32x8xf32>
    %4 = vector.shape_cast %3 : vector<1x32x8xf32> to vector<32x8xf32>
    %c0_3 = arith.constant 0 : index
    %c0_4 = arith.constant 0 : index
    %c0_5 = arith.constant 0 : index
    %5 = vector.load %arg5[%c0_3, %c0_4, %c0_5] : memref<1x32x8xf32, #tpu.memory_space<vmem>>, vector<1x32x8xf32>
    %6 = vector.shape_cast %5 : vector<1x32x8xf32> to vector<32x8xf32>
    %c0_6 = arith.constant 0 : index
    %c0_7 = arith.constant 0 : index
    %c0_8 = arith.constant 0 : index
    %7 = vector.load %arg6[%c0_6, %c0_7, %c0_8] : memref<1x32x8xf32, #tpu.memory_space<vmem>>, vector<1x32x8xf32>
    %8 = vector.shape_cast %7 : vector<1x32x8xf32> to vector<32x8xf32>
    %c0_9 = arith.constant 0 : index
    %c0_10 = arith.constant 0 : index
    %c0_11 = arith.constant 0 : index
    %9 = vector.load %arg7[%c0_9, %c0_10, %c0_11] : memref<1x8x32xf32, #tpu.memory_space<vmem>>, vector<1x8x32xf32>
    %10 = vector.shape_cast %9 : vector<1x8x32xf32> to vector<8x32xf32>
    %c0_12 = arith.constant 0 : index
    %c0_13 = arith.constant 0 : index
    %11 = vector.load %arg14[%c0_12, %c0_13] : memref<8x32xf32, #tpu.memory_space<vmem>>, vector<8x32xf32>
    %cst = arith.constant dense<0.000000e+00> : vector<8x8xf32>
    %12 = tpu.matmul %11, %4, %cst {dimension_numbers = #tpu.dot_dimension_numbers<[1], [0], [0], [1], [0, 0, 1, 1], [], []>} : vector<8x32xf32>, vector<32x8xf32>, vector<8x8xf32> -> vector<8x8xf32>
    %c0_14 = arith.constant 0 : index
    %c0_15 = arith.constant 0 : index
    %13 = vector.load %arg15[%c0_14, %c0_15] : memref<32x32xf32, #tpu.memory_space<vmem>>, vector<32x32xf32>
    %cst_16 = arith.constant dense<0.000000e+00> : vector<32x8xf32>
    %14 = tpu.matmul %13, %6, %cst_16 {dimension_numbers = #tpu.dot_dimension_numbers<[1], [0], [0], [1], [0, 0, 1, 1], [], []>} : vector<32x32xf32>, vector<32x8xf32>, vector<32x8xf32> -> vector<32x8xf32>
    %c0_17 = arith.constant 0 : index
    %c0_18 = arith.constant 0 : index
    %15 = vector.load %arg15[%c0_17, %c0_18] : memref<32x32xf32, #tpu.memory_space<vmem>>, vector<32x32xf32>
    %cst_19 = arith.constant dense<0.000000e+00> : vector<32x8xf32>
    %16 = tpu.matmul %15, %8, %cst_19 {dimension_numbers = #tpu.dot_dimension_numbers<[1], [0], [0], [1], [0, 0, 1, 1], [], []>} : vector<32x32xf32>, vector<32x8xf32>, vector<32x8xf32> -> vector<32x8xf32>
    %17 = vector.shape_cast %14 : vector<32x8xf32> to vector<2x16x8xf32>
    %18 = vector.shape_cast %16 : vector<32x8xf32> to vector<2x16x8xf32>
    %19 = vector.shape_cast %12 : vector<8x8xf32> to vector<1x8x8xf32>
    %20 = vector.shape_cast %19 : vector<1x8x8xf32> to vector<1x8x8xf32>
    %21 = vector.broadcast %20 : vector<1x8x8xf32> to vector<2x8x8xf32>
    "tpu.trace_start"() <{level = 10 : i32, message = "bqd,bkd->bqk"}> : () -> ()
    %cst_20 = arith.constant dense<0.000000e+00> : vector<2x8x16xf32>
    %22 = tpu.matmul %21, %17, %cst_20 {dimension_numbers = #tpu.dot_dimension_numbers<[2], [2], [1], [1], [0, 0, 0, 1, 1, 1], [0], [0]>} : vector<2x8x8xf32>, vector<2x16x8xf32>, vector<2x8x16xf32> -> vector<2x8x16xf32>
    "tpu.trace_stop"() : () -> ()
    %cst_21 = arith.constant 0.353553385 : f32
    %23 = vector.broadcast %cst_21 : f32 to vector<2x8x16xf32>
    %24 = arith.mulf %22, %23 : vector<2x8x16xf32>
    %cst_22 = arith.constant dense<0xFF800000> : vector<2x8xf32>
    %25 = vector.multi_reduction <maximumf>, %24, %cst_22 [2] : vector<2x8x16xf32> to vector<2x8xf32>
    %26 = vector.shape_cast %25 : vector<2x8xf32> to vector<2x8x1xf32>
    %27 = vector.broadcast %26 : vector<2x8x1xf32> to vector<2x8x16xf32>
    %28 = arith.subf %24, %27 : vector<2x8x16xf32>
    %29 = math.exp %28 : vector<2x8x16xf32>
    %cst_23 = arith.constant dense<0.000000e+00> : vector<2x8xf32>
    %30 = vector.multi_reduction <add>, %29, %cst_23 [2] : vector<2x8x16xf32> to vector<2x8xf32>
    %31 = vector.shape_cast %30 : vector<2x8xf32> to vector<2x8x1xf32>
    "tpu.trace_start"() <{level = 10 : i32, message = "bqk,bkd->bqd"}> : () -> ()
    %cst_24 = arith.constant dense<0.000000e+00> : vector<2x8x8xf32>
    %32 = tpu.matmul %29, %18, %cst_24 {dimension_numbers = #tpu.dot_dimension_numbers<[2], [1], [1], [2], [0, 0, 0, 1, 1, 2], [0], [0]>} : vector<2x8x16xf32>, vector<2x16x8xf32>, vector<2x8x8xf32> -> vector<2x8x8xf32>
    "tpu.trace_stop"() : () -> ()
    %33 = tpu.reciprocal %31 : vector<2x8x1xf32> -> vector<2x8x1xf32>
    %34 = vector.broadcast %33 : vector<2x8x1xf32> to vector<2x8x8xf32>
    %35 = arith.mulf %32, %34 : vector<2x8x8xf32>
    %c0_25 = arith.constant 0 : index
    %c0_26 = arith.constant 0 : index
    %36 = vector.load %arg16[%c0_25, %c0_26] : memref<16x32xf32, #tpu.memory_space<vmem>>, vector<16x32xf32>
    %37 = vector.shape_cast %35 : vector<2x8x8xf32> to vector<16x8xf32>
    %cst_27 = arith.constant dense<0.000000e+00> : vector<16x32xf32>
    %38 = tpu.matmul %37, %10, %cst_27 {dimension_numbers = #tpu.dot_dimension_numbers<[1], [0], [0], [1], [0, 0, 1, 1], [], []>} : vector<16x8xf32>, vector<8x32xf32>, vector<16x32xf32> -> vector<16x32xf32>
    %39 = arith.addf %36, %38 : vector<16x32xf32>
    %c0_28 = arith.constant 0 : index
    %c0_29 = arith.constant 0 : index
    %40 = vector.load %arg16[%c0_28, %c0_29] : memref<16x32xf32, #tpu.memory_space<vmem>>, vector<16x32xf32>
    tpu.vector_store %arg16[%c0_28, %c0_29], %39 {strides = array<i32>} : memref<16x32xf32, #tpu.memory_space<vmem>>, vector<16x32xf32>,
    %c3_i32 = arith.constant 3 : i32
    %41 = arith.cmpi eq, %arg1, %c3_i32 : i32
    %42 = arith.extui %41 : i1 to i32
    %c0_i32_30 = arith.constant 0 : i32
    %43 = arith.cmpi ne, %42, %c0_i32_30 : i32
    scf.if %43 {
      %c0_31 = arith.constant 0 : index
      %c0_32 = arith.constant 0 : index
      %44 = vector.load %arg16[%c0_31, %c0_32] : memref<16x32xf32, #tpu.memory_space<vmem>>, vector<16x32xf32>
      %45 = vector.shape_cast %44 : vector<16x32xf32> to vector<2x8x32xf32>
      %c0_33 = arith.constant 0 : index
      %c0_34 = arith.constant 0 : index
      %46 = vector.load %arg8[%c0_33, %c0_34] : memref<1x32xf32, #tpu.memory_space<vmem>>, vector<1x32xf32>
      %47 = vector.shape_cast %46 : vector<1x32xf32> to vector<1x1x32xf32>
      %48 = vector.broadcast %47 : vector<1x1x32xf32> to vector<2x8x32xf32>
      %49 = arith.addf %45, %48 : vector<2x8x32xf32>
      %c0_35 = arith.constant 0 : index
      %c0_36 = arith.constant 0 : index
      %50 = vector.load %arg2[%c0_35, %c0_36] : memref<8x32xf32, #tpu.memory_space<vmem>>, vector<8x32xf32>
      %51 = vector.shape_cast %50 : vector<8x32xf32> to vector<1x8x32xf32>
      %52 = vector.shape_cast %51 : vector<1x8x32xf32> to vector<1x8x32xf32>
      %53 = vector.broadcast %52 : vector<1x8x32xf32> to vector<2x8x32xf32>
      %54 = arith.addf %49, %53 : vector<2x8x32xf32>
      %c0_37 = arith.constant 0 : index
      %c0_38 = arith.constant 0 : index
      %c0_39 = arith.constant 0 : index
      %55 = vector.load %arg13[%c0_37, %c0_38, %c0_39] : memref<2x8x32xf32, #tpu.memory_space<vmem>>, vector<2x8x32xf32>
      tpu.vector_store %arg13[%c0_37, %c0_38, %c0_39], %54 {strides = array<i32>} : memref<2x8x32xf32, #tpu.memory_space<vmem>>, vector<2x8x32xf32>,
    } else {
    }
    return
  }
  func.func @transform_0(%arg0: i32, %arg1: i32) -> (i32, i32) {
    %c0_i32 = arith.constant 0 : i32
    %c0_i32_0 = arith.constant 0 : i32
    %c0_i32_1 = arith.constant 0 : i32
    return %c0_i32, %c0_i32_0 : i32, i32
  }
  func.func @transform_1(%arg0: i32, %arg1: i32) -> (i32, i32, i32) {
    %c0_i32 = arith.constant 0 : i32
    %c0_i32_0 = arith.constant 0 : i32
    %c0_i32_1 = arith.constant 0 : i32
    return %arg0, %c0_i32, %c0_i32_0 : i32, i32, i32
  }
  func.func @transform_2(%arg0: i32, %arg1: i32) -> (i32, i32, i32) {
    %c0_i32 = arith.constant 0 : i32
    %c0_i32_0 = arith.constant 0 : i32
    %c0_i32_1 = arith.constant 0 : i32
    return %arg1, %c0_i32, %c0_i32_0 : i32, i32, i32
  }
  func.func @transform_3(%arg0: i32, %arg1: i32) -> (i32, i32, i32) {
    %c0_i32 = arith.constant 0 : i32
    %c0_i32_0 = arith.constant 0 : i32
    %c0_i32_1 = arith.constant 0 : i32
    return %arg1, %c0_i32, %c0_i32_0 : i32, i32, i32
  }
  func.func @transform_4(%arg0: i32, %arg1: i32) -> (i32, i32, i32) {
    %c0_i32 = arith.constant 0 : i32
    %c0_i32_0 = arith.constant 0 : i32
    %c0_i32_1 = arith.constant 0 : i32
    return %arg1, %c0_i32, %c0_i32_0 : i32, i32, i32
  }
  func.func @transform_5(%arg0: i32, %arg1: i32) -> (i32, i32, i32) {
    %c0_i32 = arith.constant 0 : i32
    %c0_i32_0 = arith.constant 0 : i32
    %c0_i32_1 = arith.constant 0 : i32
    return %arg1, %c0_i32, %c0_i32_0 : i32, i32, i32
  }
  func.func @transform_6(%arg0: i32, %arg1: i32) -> (i32, i32) {
    %c0_i32 = arith.constant 0 : i32
    %c0_i32_0 = arith.constant 0 : i32
    %c0_i32_1 = arith.constant 0 : i32
    return %c0_i32, %c0_i32_0 : i32, i32
  }
  func.func @transform_7(%arg0: i32, %arg1: i32) -> (i32, i32) {
    %c0_i32 = arith.constant 0 : i32
    %c0_i32_0 = arith.constant 0 : i32
    %c0_i32_1 = arith.constant 0 : i32
    return %c0_i32, %c0_i32_0 : i32, i32
  }
  func.func @transform_8(%arg0: i32, %arg1: i32) -> (i32, i32) {
    %c0_i32 = arith.constant 0 : i32
    %c0_i32_0 = arith.constant 0 : i32
    %c0_i32_1 = arith.constant 0 : i32
    return %c0_i32, %c0_i32_0 : i32, i32
  }
  func.func @transform_9(%arg0: i32, %arg1: i32) -> (i32, i32) {
    %c0_i32 = arith.constant 0 : i32
    %c0_i32_0 = arith.constant 0 : i32
    %c0_i32_1 = arith.constant 0 : i32
    return %c0_i32, %c0_i32_0 : i32, i32
  }
  func.func @transform_10(%arg0: i32, %arg1: i32) -> (i32, i32) {
    %c0_i32 = arith.constant 0 : i32
    %c0_i32_0 = arith.constant 0 : i32
    %c0_i32_1 = arith.constant 0 : i32
    return %c0_i32, %c0_i32_0 : i32, i32
  }
  func.func @transform_11(%arg0: i32, %arg1: i32) -> (i32, i32, i32) {
    %c0_i32 = arith.constant 0 : i32
    %c0_i32_0 = arith.constant 0 : i32
    %c0_i32_1 = arith.constant 0 : i32
    return %arg0, %c0_i32, %c0_i32_0 : i32, i32, i32
  }
}

</mosaic_0001>

<llo_original>
// kernel: tpu_custom_call.1
$region0: #{tpu_custom_call.1}
  #allocation0 [shape = 'u32[]', space=smem, size = 0x4, offset = 0x4, fixed_abs, tag = 'smem constant byte address 0x4 - core index']
  #allocation1 [shape = 'u32[144,128]{1,0:T(1,128)}', space=vmem, size = 0x12000, scoped, tag = 'internal scratch']
  #allocation2 [shape = 'f32[8,32]{1,0:T(8,128)}', space=vmem, size = 0x1000, scoped, tag = 'scratch operand']
  #allocation3 [shape = 'f32[32,32]{1,0:T(8,128)}', space=vmem, size = 0x4000, scoped, tag = 'scratch operand']
  #allocation4 [shape = 'f32[16,32]{1,0:T(8,128)}', space=vmem, size = 0x2000, scoped, tag = 'scratch operand']
  %s0 = inlined_call_operand.vmem [shape: f32[8,32], index: 0, kind: input, shape index: {}]
  %s1 = inlined_call_operand.vmem [shape: f32[2,16,32], index: 1, kind: input, shape index: {}]
  %s2 = inlined_call_operand.vmem [shape: f32[4,32,8], index: 2, kind: input, shape index: {}]
  %s3 = inlined_call_operand.vmem [shape: f32[4,32,8], index: 3, kind: input, shape index: {}]
  %s4 = inlined_call_operand.vmem [shape: f32[4,32,8], index: 4, kind: input, shape index: {}]
  %s5 = inlined_call_operand.vmem [shape: f32[4,8,32], index: 5, kind: input, shape index: {}]
  %s6 = inlined_call_operand.vmem [shape: f32[1,32], index: 6, kind: input, shape index: {}]
  %s7 = inlined_call_operand.vmem [shape: f32[1,32], index: 7, kind: input, shape index: {}]
  %s8 = inlined_call_operand.vmem [shape: f32[1,32], index: 8, kind: input, shape index: {}]
  %s9 = inlined_call_operand.vmem [shape: f32[1,32], index: 9, kind: input, shape index: {}]
  %s10 = inlined_call_operand.vmem [shape: f32[1,32], index: 10, kind: input, shape index: {}]
  %s11 = inlined_call_operand.hbm [shape: f32[2,8,32], index: 11, kind: output, shape index: {}]
  %s12 = sld [smem:[#allocation0]]
  $region85: #{tpu_custom_call.1} parent=0
    _
  %s14 = ssub.s32 1, %s12
  %s15 = scalar_select 0, %s14, %s12
  $region1: #{tpu_custom_call.1} parent=0
    #allocation5 [shape = 'u8[8192]{0}', space=vmem, size = 0x2000, scoped, tag = 'output window, operand 0, single buffered']
    #allocation6 [shape = 's32[2]{0}', space=sflag, size = 0x8, scoped, tag = 'scoped memory for tpu_custom_call.1']
    %16 = vsyncpa [#allocation6], 0
    loop: start=0, step=1, limit=6
    $region2: #{tpu_custom_call.1} parent=1 // loop_pre_header
      _
    $region3: #{tpu_custom_call.1} parent=1 // loop_header
      %s18 = sphi 0, %s22
      %p19 = scmp.ge.s32.totalorder %s18, 6
      %s25 = sphi 0, %s37
      %s26 = sphi 0, %s33
      %s27 = sphi 0, %s25
      %s28 = sphi 0, %s26
      %s29 = sphi 0, %s27
      %s30 = sphi 0, %s28
      %s38 = sphi 0, %s38
      %s40 = sphi 0, %s38
      %s41 = sphi 0, %s40
      %s55 = sphi 0, %s41
      %s61 = sphi 0, %s63
      %s64 = sphi 0, %s61
      %s65 = sphi 0, %s64
      %s81 = sphi 0, %s65
      %s87 = sphi 0, %s89
      %s90 = sphi 0, %s87
      %s91 = sphi 0, %s90
      %s107 = sphi 0, %s91
      %s113 = sphi 0, %s115
      %s116 = sphi 0, %s113
      %s117 = sphi 0, %s116
      %s133 = sphi 0, %s117
      %s139 = sphi 0, %s141
      %s142 = sphi 0, %s139
      %s143 = sphi 0, %s142
      %s159 = sphi 0, %s143
      %s165 = sphi 0, %s167
      %s168 = sphi 0, %s165
      %s169 = sphi 0, %s168
      %s185 = sphi 0, %s169
      %s189 = sphi 0, %s189
      %s191 = sphi 0, %s189
      %s192 = sphi 0, %s191
      %s206 = sphi 0, %s192
      %s210 = sphi 0, %s210
      %s212 = sphi 0, %s210
      %s213 = sphi 0, %s212
      %s227 = sphi 0, %s213
      %s231 = sphi 0, %s231
      %s233 = sphi 0, %s231
      %s234 = sphi 0, %s233
      %s248 = sphi 0, %s234
      %s252 = sphi 0, %s252
      %s254 = sphi 0, %s252
      %s255 = sphi 0, %s254
      %s269 = sphi 0, %s255
      %s273 = sphi 0, %s273
      %s275 = sphi 0, %s273
      %s276 = sphi 0, %s275
      %s290 = sphi 0, %s276
      %s296 = sphi 0, %s298
      %s299 = sphi 0, %s296
      %s300 = sphi 0, %s299
      %s316 = sphi 0, %s300
    $region4: #{tpu_custom_call.1} parent=1 // loop_header_branch
      %21 = sbr.rel (%p19) target = $region8
    $region5: #{tpu_custom_call.1} parent=1 // loop_body
      %s23 = ssub.s32 %s18, 1
      %s24 = ssub.s32 %s18, 2
      %s31 = sadd.s32 1, %s26
      %p32 = scmp.ge.s32.totalorder %s31, 4
      %s33 = scalar_select %p32, 0, %s31
      %s34 = sadd.s32 1, %s25
      %s35 = scalar_select %p32, %s34, %s25
      %p36 = scmp.ge.s32.totalorder %s35, 1
      %s37 = scalar_select %p36, 0, %s35
      %s39 = sadd.s32 %s38, 1
      %p42 = scmp.eq.s32.totalorder %s18, 3
      %p43 = scmp.ne.s32.totalorder %s38, %s40
      %p44 = scmp.eq.s32.totalorder %s18, 0
      %p45 = por %p43, %p44
      %p46 = scmp.ne.s32.totalorder %s38, %s40
      %p47 = scmp.eq.s32.totalorder %s23, 3
      %p48 = por %p46, %p47
      %p49 = scmp.ne.s32.totalorder %s40, %s41
      %p50 = scmp.eq.s32.totalorder %s23, 0
      %p51 = por %p49, %p50
      %p52 = scmp.ne.s32.totalorder %s40, %s41
      %p53 = scmp.eq.s32.totalorder %s24, 3
      %p54 = por %p52, %p53
      %p56 = scmp.ne.s32.totalorder %s41, %s55
      %p57 = scmp.eq.s32.totalorder %s24, 0
      %p58 = por %p56, %p57
      %s59 = ssub.s32 %s25, %s37
      %p60 = scmp.eq.s32.totalorder %s59, 0
      %s62 = sadd.s32 %s61, 1
      %s63 = scalar_select %p60, %s61, %s62
      %p66 = pneg %p60
      %p67 = scmp.eq.s32.totalorder %s18, 3
      %p68 = por %p66, %p67
      %p69 = scmp.ne.s32.totalorder %s61, %s64
      %p70 = scmp.eq.s32.totalorder %s18, 0
      %p71 = por %p69, %p70
      %p72 = scmp.ne.s32.totalorder %s61, %s64
      %p73 = scmp.eq.s32.totalorder %s23, 3
      %p74 = por %p72, %p73
      %p75 = scmp.ne.s32.totalorder %s64, %s65
      %p76 = scmp.eq.s32.totalorder %s23, 0
      %p77 = por %p75, %p76
      %p78 = scmp.ne.s32.totalorder %s64, %s65
      %p79 = scmp.eq.s32.totalorder %s24, 3
      %p80 = por %p78, %p79
      %p82 = scmp.ne.s32.totalorder %s65, %s81
      %p83 = scmp.eq.s32.totalorder %s24, 0
      %p84 = por %p82, %p83
      %s85 = ssub.s32 %s26, %s33
      %p86 = scmp.eq.s32.totalorder %s85, 0
      %s88 = sadd.s32 %s87, 1
      %s89 = scalar_select %p86, %s87, %s88
      %p92 = pneg %p86
      %p93 = scmp.eq.s32.totalorder %s18, 3
      %p94 = por %p92, %p93
      %p95 = scmp.ne.s32.totalorder %s87, %s90
      %p96 = scmp.eq.s32.totalorder %s18, 0
      %p97 = por %p95, %p96
      %p98 = scmp.ne.s32.totalorder %s87, %s90
      %p99 = scmp.eq.s32.totalorder %s23, 3
      %p100 = por %p98, %p99
      %p101 = scmp.ne.s32.totalorder %s90, %s91
      %p102 = scmp.eq.s32.totalorder %s23, 0
      %p103 = por %p101, %p102
      %p104 = scmp.ne.s32.totalorder %s90, %s91
      %p105 = scmp.eq.s32.totalorder %s24, 3
      %p106 = por %p104, %p105
      %p108 = scmp.ne.s32.totalorder %s91, %s107
      %p109 = scmp.eq.s32.totalorder %s24, 0
      %p110 = por %p108, %p109
      %s111 = ssub.s32 %s26, %s33
      %p112 = scmp.eq.s32.totalorder %s111, 0
      %s114 = sadd.s32 %s113, 1
      %s115 = scalar_select %p112, %s113, %s114
      %p118 = pneg %p112
      %p119 = scmp.eq.s32.totalorder %s18, 3
      %p120 = por %p118, %p119
      %p121 = scmp.ne.s32.totalorder %s113, %s116
      %p122 = scmp.eq.s32.totalorder %s18, 0
      %p123 = por %p121, %p122
      %p124 = scmp.ne.s32.totalorder %s113, %s116
      %p125 = scmp.eq.s32.totalorder %s23, 3
      %p126 = por %p124, %p125
      %p127 = scmp.ne.s32.totalorder %s116, %s117
      %p128 = scmp.eq.s32.totalorder %s23, 0
      %p129 = por %p127, %p128
      %p130 = scmp.ne.s32.totalorder %s116, %s117
      %p131 = scmp.eq.s32.totalorder %s24, 3
      %p132 = por %p130, %p131
      %p134 = scmp.ne.s32.totalorder %s117, %s133
      %p135 = scmp.eq.s32.totalorder %s24, 0
      %p136 = por %p134, %p135
      %s137 = ssub.s32 %s26, %s33
      %p138 = scmp.eq.s32.totalorder %s137, 0
      %s140 = sadd.s32 %s139, 1
      %s141 = scalar_select %p138, %s139, %s140
      %p144 = pneg %p138
      %p145 = scmp.eq.s32.totalorder %s18, 3
      %p146 = por %p144, %p145
      %p147 = scmp.ne.s32.totalorder %s139, %s142
      %p148 = scmp.eq.s32.totalorder %s18, 0
      %p149 = por %p147, %p148
      %p150 = scmp.ne.s32.totalorder %s139, %s142
      %p151 = scmp.eq.s32.totalorder %s23, 3
      %p152 = por %p150, %p151
      %p153 = scmp.ne.s32.totalorder %s142, %s143
      %p154 = scmp.eq.s32.totalorder %s23, 0
      %p155 = por %p153, %p154
      %p156 = scmp.ne.s32.totalorder %s142, %s143
      %p157 = scmp.eq.s32.totalorder %s24, 3
      %p158 = por %p156, %p157
      %p160 = scmp.ne.s32.totalorder %s143, %s159
      %p161 = scmp.eq.s32.totalorder %s24, 0
      %p162 = por %p160, %p161
      %s163 = ssub.s32 %s26, %s33
      %p164 = scmp.eq.s32.totalorder %s163, 0
      %s166 = sadd.s32 %s165, 1
      %s167 = scalar_select %p164, %s165, %s166
      %p170 = pneg %p164
      %p171 = scmp.eq.s32.totalorder %s18, 3
      %p172 = por %p170, %p171
      %p173 = scmp.ne.s32.totalorder %s165, %s168
      %p174 = scmp.eq.s32.totalorder %s18, 0
      %p175 = por %p173, %p174
      %p176 = scmp.ne.s32.totalorder %s165, %s168
      %p177 = scmp.eq.s32.totalorder %s23, 3
      %p178 = por %p176, %p177
      %p179 = scmp.ne.s32.totalorder %s168, %s169
      %p180 = scmp.eq.s32.totalorder %s23, 0
      %p181 = por %p179, %p180
      %p182 = scmp.ne.s32.totalorder %s168, %s169
      %p183 = scmp.eq.s32.totalorder %s24, 3
      %p184 = por %p182, %p183
      %p186 = scmp.ne.s32.totalorder %s169, %s185
      %p187 = scmp.eq.s32.totalorder %s24, 0
      %p188 = por %p186, %p187
      %s190 = sadd.s32 %s189, 1
      %p193 = scmp.eq.s32.totalorder %s18, 3
      %p194 = scmp.ne.s32.totalorder %s189, %s191
      %p195 = scmp.eq.s32.totalorder %s18, 0
      %p196 = por %p194, %p195
      %p197 = scmp.ne.s32.totalorder %s189, %s191
      %p198 = scmp.eq.s32.totalorder %s23, 3
      %p199 = por %p197, %p198
      %p200 = scmp.ne.s32.totalorder %s191, %s192
      %p201 = scmp.eq.s32.totalorder %s23, 0
      %p202 = por %p200, %p201
      %p203 = scmp.ne.s32.totalorder %s191, %s192
      %p204 = scmp.eq.s32.totalorder %s24, 3
      %p205 = por %p203, %p204
      %p207 = scmp.ne.s32.totalorder %s192, %s206
      %p208 = scmp.eq.s32.totalorder %s24, 0
      %p209 = por %p207, %p208
      %s211 = sadd.s32 %s210, 1
      %p214 = scmp.eq.s32.totalorder %s18, 3
      %p215 = scmp.ne.s32.totalorder %s210, %s212
      %p216 = scmp.eq.s32.totalorder %s18, 0
      %p217 = por %p215, %p216
      %p218 = scmp.ne.s32.totalorder %s210, %s212
      %p219 = scmp.eq.s32.totalorder %s23, 3
      %p220 = por %p218, %p219
      %p221 = scmp.ne.s32.totalorder %s212, %s213
      %p222 = scmp.eq.s32.totalorder %s23, 0
      %p223 = por %p221, %p222
      %p224 = scmp.ne.s32.totalorder %s212, %s213
      %p225 = scmp.eq.s32.totalorder %s24, 3
      %p226 = por %p224, %p225
      %p228 = scmp.ne.s32.totalorder %s213, %s227
      %p229 = scmp.eq.s32.totalorder %s24, 0
      %p230 = por %p228, %p229
      %s232 = sadd.s32 %s231, 1
      %p235 = scmp.eq.s32.totalorder %s18, 3
      %p236 = scmp.ne.s32.totalorder %s231, %s233
      %p237 = scmp.eq.s32.totalorder %s18, 0
      %p238 = por %p236, %p237
      %p239 = scmp.ne.s32.totalorder %s231, %s233
      %p240 = scmp.eq.s32.totalorder %s23, 3
      %p241 = por %p239, %p240
      %p242 = scmp.ne.s32.totalorder %s233, %s234
      %p243 = scmp.eq.s32.totalorder %s23, 0
      %p244 = por %p242, %p243
      %p245 = scmp.ne.s32.totalorder %s233, %s234
      %p246 = scmp.eq.s32.totalorder %s24, 3
      %p247 = por %p245, %p246
      %p249 = scmp.ne.s32.totalorder %s234, %s248
      %p250 = scmp.eq.s32.totalorder %s24, 0
      %p251 = por %p249, %p250
      %s253 = sadd.s32 %s252, 1
      %p256 = scmp.eq.s32.totalorder %s18, 3
      %p257 = scmp.ne.s32.totalorder %s252, %s254
      %p258 = scmp.eq.s32.totalorder %s18, 0
      %p259 = por %p257, %p258
      %p260 = scmp.ne.s32.totalorder %s252, %s254
      %p261 = scmp.eq.s32.totalorder %s23, 3
      %p262 = por %p260, %p261
      %p263 = scmp.ne.s32.totalorder %s254, %s255
      %p264 = scmp.eq.s32.totalorder %s23, 0
      %p265 = por %p263, %p264
      %p266 = scmp.ne.s32.totalorder %s254, %s255
      %p267 = scmp.eq.s32.totalorder %s24, 3
      %p268 = por %p266, %p267
      %p270 = scmp.ne.s32.totalorder %s255, %s269
      %p271 = scmp.eq.s32.totalorder %s24, 0
      %p272 = por %p270, %p271
      %s274 = sadd.s32 %s273, 1
      %p277 = scmp.eq.s32.totalorder %s18, 3
      %p278 = scmp.ne.s32.totalorder %s273, %s275
      %p279 = scmp.eq.s32.totalorder %s18, 0
      %p280 = por %p278, %p279
      %p281 = scmp.ne.s32.totalorder %s273, %s275
      %p282 = scmp.eq.s32.totalorder %s23, 3
      %p283 = por %p281, %p282
      %p284 = scmp.ne.s32.totalorder %s275, %s276
      %p285 = scmp.eq.s32.totalorder %s23, 0
      %p286 = por %p284, %p285
      %p287 = scmp.ne.s32.totalorder %s275, %s276
      %p288 = scmp.eq.s32.totalorder %s24, 3
      %p289 = por %p287, %p288
      %p291 = scmp.ne.s32.totalorder %s276, %s290
      %p292 = scmp.eq.s32.totalorder %s24, 0
      %p293 = por %p291, %p292
      %s294 = ssub.s32 %s25, %s37
      %p295 = scmp.eq.s32.totalorder %s294, 0
      %s297 = sadd.s32 %s296, 1
      %s298 = scalar_select %p295, %s296, %s297
      %p301 = pneg %p295
      %p302 = scmp.eq.s32.totalorder %s18, 3
      %p303 = por %p301, %p302
      %p304 = scmp.ne.s32.totalorder %s296, %s299
      %p305 = scmp.eq.s32.totalorder %s18, 0
      %p306 = por %p304, %p305
      %p307 = scmp.ne.s32.totalorder %s296, %s299
      %p308 = scmp.eq.s32.totalorder %s23, 3
      %p309 = por %p307, %p308
      %p310 = scmp.ne.s32.totalorder %s299, %s300
      %p311 = scmp.eq.s32.totalorder %s23, 0
      %p312 = por %p310, %p311
      %p313 = scmp.ne.s32.totalorder %s299, %s300
      %p314 = scmp.eq.s32.totalorder %s24, 3
      %p315 = por %p313, %p314
      %p317 = scmp.ne.s32.totalorder %s300, %s316
      %p318 = scmp.eq.s32.totalorder %s24, 0
      %p319 = por %p317, %p318
      %p320 = scmp.le.s32.totalorder 1, %s18
      %p321 = scmp.lt.s32.totalorder %s18, 5
      %p322 = pnand %p320, %p321
      %p323 = pneg %p322
      // Predicated region
      $region9: #{tpu_custom_call.1} parent=5 // pred_check
        _
      $region10: #{tpu_custom_call.1} parent=5 // pred_check_branch
        %325 = sbr.rel (%p322) target = $region12
      $region11: #{tpu_custom_call.1} parent=5 // pred_region
        %s326 = ssub.s32 %s18, 1
        // Predicated region
        $region13: #{tpu_custom_call.1} parent=11 // pred_check
          %p327 = pneg %p51
        $region14: #{tpu_custom_call.1} parent=11 // pred_check_branch
          %329 = sbr.rel (%p327) target = $region16
        $region15: #{tpu_custom_call.1} parent=11 // pred_region
          _
        $region16: #{tpu_custom_call.1} parent=11 // pred_fallthru
          _
        // Predicated region
        $region17: #{tpu_custom_call.1} parent=11 // pred_check
          %p330 = pneg %p77
        $region18: #{tpu_custom_call.1} parent=11 // pred_check_branch
          %332 = sbr.rel (%p330) target = $region20
        $region19: #{tpu_custom_call.1} parent=11 // pred_region
          %s333 = smul.u32 2, %s27
          %p334 = scmp.lt.s32.totalorder %s333, 1
          %s335 = scalar_select %p334, %s333, 1
          %s336 = smul.addr %s335, 2
          %s337 = smul.addr %s336, 8
          %s338 = scalar_lea.vmem %s1, %s337
          %s339 = smul.u32 2, %s27
        $region20: #{tpu_custom_call.1} parent=11 // pred_fallthru
          _
        // Predicated region
        $region21: #{tpu_custom_call.1} parent=11 // pred_check
          %p340 = pneg %p202
        $region22: #{tpu_custom_call.1} parent=11 // pred_check_branch
          %342 = sbr.rel (%p340) target = $region24
        $region23: #{tpu_custom_call.1} parent=11 // pred_region
          _
        $region24: #{tpu_custom_call.1} parent=11 // pred_fallthru
          _
        // Predicated region
        $region25: #{tpu_custom_call.1} parent=11 // pred_check
          %p343 = pneg %p223
        $region26: #{tpu_custom_call.1} parent=11 // pred_check_branch
          %345 = sbr.rel (%p343) target = $region28
        $region27: #{tpu_custom_call.1} parent=11 // pred_region
          _
        $region28: #{tpu_custom_call.1} parent=11 // pred_fallthru
          _
        // Predicated region
        $region29: #{tpu_custom_call.1} parent=11 // pred_check
          %p346 = pneg %p244
        $region30: #{tpu_custom_call.1} parent=11 // pred_check_branch
          %348 = sbr.rel (%p346) target = $region32
        $region31: #{tpu_custom_call.1} parent=11 // pred_region
          _
        $region32: #{tpu_custom_call.1} parent=11 // pred_fallthru
          _
        // Predicated region
        $region33: #{tpu_custom_call.1} parent=11 // pred_check
          %p349 = pneg %p265
        $region34: #{tpu_custom_call.1} parent=11 // pred_check_branch
          %351 = sbr.rel (%p349) target = $region36
        $region35: #{tpu_custom_call.1} parent=11 // pred_region
          _
        $region36: #{tpu_custom_call.1} parent=11 // pred_fallthru
          _
        // Predicated region
        $region37: #{tpu_custom_call.1} parent=11 // pred_check
          %p352 = pneg %p286
        $region38: #{tpu_custom_call.1} parent=11 // pred_check_branch
          %354 = sbr.rel (%p352) target = $region40
        $region39: #{tpu_custom_call.1} parent=11 // pred_region
          _
        $region40: #{tpu_custom_call.1} parent=11 // pred_fallthru
          _
      $region12: #{tpu_custom_call.1} parent=5 // pred_fallthru
        _
      %p355 = scmp.lt.s32.totalorder %s18, 4
      // Predicated region
      $region41: #{tpu_custom_call.1} parent=5 // pred_check
        %p356 = pneg %p355
      $region42: #{tpu_custom_call.1} parent=5 // pred_check_branch
        %358 = sbr.rel (%p356) target = $region44
      $region43: #{tpu_custom_call.1} parent=5 // pred_region
        // Predicated region
        $region45: #{tpu_custom_call.1} parent=43 // pred_check
          %p359 = pneg %p97
        $region46: #{tpu_custom_call.1} parent=43 // pred_check_branch
          %361 = sbr.rel (%p359) target = $region48
        $region47: #{tpu_custom_call.1} parent=43 // pred_region
          %p362 = scmp.lt.s32.totalorder %s26, 3
          %s363 = scalar_select %p362, %s26, 3
          %s364 = smul.addr %s363, 4
          %s365 = smul.addr %s364, 8
          %s366 = scalar_lea.vmem %s2, %s365
        $region48: #{tpu_custom_call.1} parent=43 // pred_fallthru
          _
        // Predicated region
        $region49: #{tpu_custom_call.1} parent=43 // pred_check
          %p367 = pneg %p123
        $region50: #{tpu_custom_call.1} parent=43 // pred_check_branch
          %369 = sbr.rel (%p367) target = $region52
        $region51: #{tpu_custom_call.1} parent=43 // pred_region
          %p370 = scmp.lt.s32.totalorder %s26, 3
          %s371 = scalar_select %p370, %s26, 3
          %s372 = smul.addr %s371, 4
          %s373 = smul.addr %s372, 8
          %s374 = scalar_lea.vmem %s3, %s373
        $region52: #{tpu_custom_call.1} parent=43 // pred_fallthru
          _
        // Predicated region
        $region53: #{tpu_custom_call.1} parent=43 // pred_check
          %p375 = pneg %p149
        $region54: #{tpu_custom_call.1} parent=43 // pred_check_branch
          %377 = sbr.rel (%p375) target = $region56
        $region55: #{tpu_custom_call.1} parent=43 // pred_region
          %p378 = scmp.lt.s32.totalorder %s26, 3
          %s379 = scalar_select %p378, %s26, 3
          %s380 = smul.addr %s379, 4
          %s381 = smul.addr %s380, 8
          %s382 = scalar_lea.vmem %s4, %s381
        $region56: #{tpu_custom_call.1} parent=43 // pred_fallthru
          _
        // Predicated region
        $region57: #{tpu_custom_call.1} parent=43 // pred_check
          %p383 = pneg %p175
        $region58: #{tpu_custom_call.1} parent=43 // pred_check_branch
          %385 = sbr.rel (%p383) target = $region60
        $region59: #{tpu_custom_call.1} parent=43 // pred_region
          %p386 = scmp.lt.s32.totalorder %s26, 3
          %s387 = scalar_select %p386, %s26, 3
          %s388 = smul.addr %s387, 8
          %s389 = scalar_lea.vmem %s5, %s388
        $region60: #{tpu_custom_call.1} parent=43 // pred_fallthru
          _
      $region44: #{tpu_custom_call.1} parent=5 // pred_fallthru
        _
      %p390 = scmp.le.s32.totalorder 1, %s18
      %p391 = scmp.lt.s32.totalorder %s18, 5
      %p392 = pnand %p390, %p391
      %p393 = pneg %p392
      // Predicated region
      $region61: #{tpu_custom_call.1} parent=5 // pred_check
        _
      $region62: #{tpu_custom_call.1} parent=5 // pred_check_branch
        %395 = sbr.rel (%p392) target = $region64
      $region63: #{tpu_custom_call.1} parent=5 // pred_region
        %s396 = ssub.s32 %s18, 1
        %p397 = pneg %p51
        %p398 = pneg %p48
        %s399 = smul.u32 2, %s27
        %p400 = scmp.lt.s32.totalorder %s399, 1
        %s401 = scalar_select %p400, %s399, 1
        %s402 = smul.addr %s401, 2
        %s403 = smul.addr %s402, 8
        %s404 = scalar_lea.vmem %s1, %s403
        %p405 = pneg %p77
        %p406 = pneg %p74
        %p407 = scmp.lt.s32.totalorder %s28, 3
        %s408 = scalar_select %p407, %s28, 3
        %s409 = smul.addr %s408, 4
        %s410 = smul.addr %s409, 8
        %s411 = scalar_lea.vmem %s2, %s410
        %p412 = pneg %p103
        %p413 = pneg %p100
        %p414 = scmp.lt.s32.totalorder %s28, 3
        %s415 = scalar_select %p414, %s28, 3
        %s416 = smul.addr %s415, 4
        %s417 = smul.addr %s416, 8
        %s418 = scalar_lea.vmem %s3, %s417
        %p419 = pneg %p129
        %p420 = pneg %p126
        %p421 = scmp.lt.s32.totalorder %s28, 3
        %s422 = scalar_select %p421, %s28, 3
        %s423 = smul.addr %s422, 4
        %s424 = smul.addr %s423, 8
        %s425 = scalar_lea.vmem %s4, %s424
        %p426 = pneg %p155
        %p427 = pneg %p152
        %p428 = scmp.lt.s32.totalorder %s28, 3
        %s429 = scalar_select %p428, %s28, 3
        %s430 = smul.addr %s429, 8
        %s431 = scalar_lea.vmem %s5, %s430
        %p432 = pneg %p181
        %p433 = pneg %p178
        %p434 = pneg %p202
        %p435 = pneg %p199
        %p436 = pneg %p223
        %p437 = pneg %p220
        %p438 = pneg %p244
        %p439 = pneg %p241
        %p440 = pneg %p265
        %p441 = pneg %p262
        %p442 = pneg %p286
        %p443 = pneg %p283
        %p444 = pneg %p312
        %p445 = pneg %p309
        %s446 = smul.u32 2, %s27
        %p447 = scmp.lt.s32.totalorder %s446, 1
        %s448 = scalar_select %p447, %s446, 1
        %s449 = smul.addr %s448, 2
        %s450 = smul.addr %s449, 8
        %s451 = scalar_lea.vmem %s1, %s450
        %s452 = smul.u32 2, %s27
        %p453 = scmp.lt.s32.totalorder %s28, 3
        %s454 = scalar_select %p453, %s28, 3
        %s455 = smul.addr %s454, 4
        %s456 = smul.addr %s455, 8
        %s457 = scalar_lea.vmem %s2, %s456
        %p458 = scmp.lt.s32.totalorder %s28, 3
        %s459 = scalar_select %p458, %s28, 3
        %s460 = smul.addr %s459, 4
        %s461 = smul.addr %s460, 8
        %s462 = scalar_lea.vmem %s3, %s461
        %p463 = scmp.lt.s32.totalorder %s28, 3
        %s464 = scalar_select %p463, %s28, 3
        %s465 = smul.addr %s464, 4
        %s466 = smul.addr %s465, 8
        %s467 = scalar_lea.vmem %s4, %s466
        %p468 = scmp.lt.s32.totalorder %s28, 3
        %s469 = scalar_select %p468, %s28, 3
        %s470 = smul.addr %s469, 8
        %s471 = scalar_lea.vmem %s5, %s470
        %s472 = smul.u32 2, %s27
        %p473 = scmp.eq.s32.totalorder %s28, 0
        // Predicated region
        $region65: #{tpu_custom_call.1} parent=63 // pred_check
          %p474 = pneg %p473
        $region66: #{tpu_custom_call.1} parent=63 // pred_check_branch
          %476 = sbr.rel (%p474) target = $region68
        $region67: #{tpu_custom_call.1} parent=63 // pred_region
          %v477 = vld [vmem:[%s0] sm:$0xff]
          %v478 = vld [vmem:[%s451] sm:$0xff]
          %v479 = vld [vmem:[%s451 + $0x8] sm:$0xff]
          %v480 = vld [vmem:[%s451 + $0x10] sm:$0xff]
          %v481 = vld [vmem:[%s451 + $0x18] sm:$0xff]
          %v482 = vld [vmem:[%s7] sm:$0x1]
          %v483 = vld [vmem:[%s8] sm:$0x1]
          %vm484 = vcmask 261120
          %v485 = vsel %vm484, %v477, 0.0
          %486 = vadd.xlane.f32.xlu0 %v485
          %v487 = vpop.xlane.xlu0 %486
          %v488 = vrcp.pop 32.0
          %v489 = vmul.f32 %v487, %v488
          %v490 = vmul.f32 %v477, %v477
          %v491 = vsel %vm484, %v490, 0.0
          %492 = vadd.xlane.f32.xlu0 %v491
          %v493 = vpop.xlane.xlu0 %492
          %v494 = vmul.f32 %v493, %v488
          %v495 = vmul.f32 %v489, %v489
          %v496 = vsub.f32 %v494, %v495
          %v497 = vsub.f32 %v477, %v489
          %v498 = vadd.f32 %v496, 1e-05
          %v499 = vrsqrt.pop %v498
          %v500 = vmul.f32 %v497, %v499
          %v502 = vlaneseq
          %v503 = vshrl.u32 %v502, 7
          %v504 = vsub.s32 0, %v503
          %v505 = vrot.slane %v482, %v504
          %v507 = vmul.f32 %v500, %v505
          %v509 = vlaneseq
          %v510 = vshrl.u32 %v509, 7
          %v511 = vsub.s32 0, %v510
          %v512 = vrot.slane %v483, %v511
          %v514 = vadd.f32 %v507, %v512
          %515 = vst.msk [vmem:[#allocation2] sm:$0xff] %vm484, %v514
          %v516 = vld [vmem:[%s9] sm:$0x1]
          %v517 = vld [vmem:[%s10] sm:$0x1]
          %v518 = vsel %vm484, %v478, 0.0
          %519 = vadd.xlane.f32.xlu0 %v518
          %v520 = vpop.xlane.xlu0 %519
          %v521 = vsel %vm484, %v479, 0.0
          %522 = vadd.xlane.f32.xlu0 %v521
          %v523 = vpop.xlane.xlu0 %522
          %v524 = vsel %vm484, %v480, 0.0
          %525 = vadd.xlane.f32.xlu0 %v524
          %v526 = vpop.xlane.xlu0 %525
          %v527 = vsel %vm484, %v481, 0.0
          %528 = vadd.xlane.f32.xlu0 %v527
          %v529 = vpop.xlane.xlu0 %528
          %v530 = vmul.f32 %v520, %v488
          %v531 = vmul.f32 %v523, %v488
          %v532 = vmul.f32 %v526, %v488
          %v533 = vmul.f32 %v529, %v488
          %v534 = vmul.f32 %v478, %v478
          %v535 = vmul.f32 %v479, %v479
          %v536 = vmul.f32 %v480, %v480
          %v537 = vmul.f32 %v481, %v481
          %v538 = vsel %vm484, %v534, 0.0
          %539 = vadd.xlane.f32.xlu0 %v538
          %v540 = vpop.xlane.xlu0 %539
          %v541 = vsel %vm484, %v535, 0.0
          %542 = vadd.xlane.f32.xlu0 %v541
          %v543 = vpop.xlane.xlu0 %542
          %v544 = vsel %vm484, %v536, 0.0
          %545 = vadd.xlane.f32.xlu0 %v544
          %v546 = vpop.xlane.xlu0 %545
          %v547 = vsel %vm484, %v537, 0.0
          %548 = vadd.xlane.f32.xlu0 %v547
          %v549 = vpop.xlane.xlu0 %548
          %v550 = vmul.f32 %v540, %v488
          %v551 = vmul.f32 %v543, %v488
          %v552 = vmul.f32 %v546, %v488
          %v553 = vmul.f32 %v549, %v488
          %v554 = vmul.f32 %v530, %v530
          %v555 = vmul.f32 %v531, %v531
          %v556 = vmul.f32 %v532, %v532
          %v557 = vmul.f32 %v533, %v533
          %v558 = vsub.f32 %v550, %v554
          %v559 = vsub.f32 %v551, %v555
          %v560 = vsub.f32 %v552, %v556
          %v561 = vsub.f32 %v553, %v557
          %v562 = vsub.f32 %v478, %v530
          %v563 = vsub.f32 %v479, %v531
          %v564 = vsub.f32 %v480, %v532
          %v565 = vsub.f32 %v481, %v533
          %v566 = vadd.f32 %v558, 1e-05
          %v567 = vadd.f32 %v559, 1e-05
          %v568 = vadd.f32 %v560, 1e-05
          %v569 = vadd.f32 %v561, 1e-05
          %v570 = vrsqrt.pop %v566
          %v571 = vrsqrt.pop %v567
          %v572 = vrsqrt.pop %v568
          %v573 = vrsqrt.pop %v569
          %v574 = vmul.f32 %v562, %v570
          %v575 = vmul.f32 %v563, %v571
          %v576 = vmul.f32 %v564, %v572
          %v577 = vmul.f32 %v565, %v573
          %v579 = vlaneseq
          %v580 = vshrl.u32 %v579, 7
          %v581 = vsub.s32 0, %v580
          %v582 = vrot.slane %v516, %v581
          %v584 = vmul.f32 %v574, %v582
          %v585 = vmul.f32 %v575, %v582
          %v586 = vmul.f32 %v576, %v582
          %v587 = vmul.f32 %v577, %v582
          %v589 = vlaneseq
          %v590 = vshrl.u32 %v589, 7
          %v591 = vsub.s32 0, %v590
          %v592 = vrot.slane %v517, %v591
          %v594 = vadd.f32 %v584, %v592
          %v595 = vadd.f32 %v585, %v592
          %v596 = vadd.f32 %v586, %v592
          %v597 = vadd.f32 %v587, %v592
          %598 = vst.msk [vmem:[#allocation3] sm:$0xff] %vm484, %v594
          %599 = vst.msk [vmem:[#allocation3 + $0x8] sm:$0xff] %vm484, %v595
          %600 = vst.msk [vmem:[#allocation3 + $0x10] sm:$0xff] %vm484, %v596
          %601 = vst.msk [vmem:[#allocation3 + $0x18] sm:$0xff] %vm484, %v597
          %602 = vst.msk [vmem:[#allocation4] sm:$0xff] %vm484, 0.0
          %603 = vst.msk [vmem:[#allocation4 + $0x8] sm:$0xff] %vm484, 0.0
        $region68: #{tpu_custom_call.1} parent=63 // pred_fallthru
          _
        %v604 = vld [vmem:[%s457] sm:$0xff]
        %v605 = vld [vmem:[%s457 + $0x8] sm:$0xff]
        %v606 = vld [vmem:[%s457 + $0x10] sm:$0xff]
        %v607 = vld [vmem:[%s457 + $0x18] sm:$0xff]
        %v608 = vld [vmem:[%s462] sm:$0xff]
        %v609 = vld [vmem:[%s462 + $0x8] sm:$0xff]
        %v610 = vld [vmem:[%s462 + $0x10] sm:$0xff]
        %v611 = vld [vmem:[%s462 + $0x18] sm:$0xff]
        %v612 = vld [vmem:[%s467] sm:$0xff]
        %v613 = vld [vmem:[%s467 + $0x8] sm:$0xff]
        %v614 = vld [vmem:[%s467 + $0x10] sm:$0xff]
        %v615 = vld [vmem:[%s467 + $0x18] sm:$0xff]
        %v616 = vld [vmem:[%s471] sm:$0xff]
        %v617 = vld [vmem:[#allocation2] sm:$0xff]
        %vm618 = vcmask 261120
        %v620 = vsel %vm618, %v617, 0
        %622 = vmatprep.subr.mxu0 0.0
        %623 = vmatpush1.msra.mxu0 %v604
        %624 = vmatprep.subr.mxu0 0.0
        %625 = vmatpush1.msra.mxu0 %v605
        %626 = vmatprep.subr.mxu0 0.0
        %627 = vmatpush1.msra.mxu0 %v606
        %628 = vmatprep.subr.mxu0 0.0
        %629 = vmatpush1.msra.mxu0 %v607
        %630 = vmatprep.subr.mxu0 0.0
        %631 = vmatpush1.msra.mxu0 0.0
        %632 = vmatprep.subr.mxu0 0.0
        %633 = vmatpush1.msra.mxu0 0.0
        %634 = vmatprep.subr.mxu0 0.0
        %635 = vmatpush1.msra.mxu0 0.0
        %636 = vmatprep.subr.mxu0 0.0
        %637 = vmatpush1.msra.mxu0 0.0
        %638 = vmatprep.subr.mxu0 0.0
        %639 = vmatpush1.msra.mxu0 0.0
        %640 = vmatprep.subr.mxu0 0.0
        %641 = vmatpush1.msra.mxu0 0.0
        %642 = vmatprep.subr.mxu0 0.0
        %643 = vmatpush1.msra.mxu0 0.0
        %644 = vmatprep.subr.mxu0 0.0
        %645 = vmatpush1.msra.mxu0 0.0
        %646 = vmatprep.subr.mxu0 0.0
        %647 = vmatpush1.msra.mxu0 0.0
        %648 = vmatprep.subr.mxu0 0.0
        %649 = vmatpush1.msra.mxu0 0.0
        %650 = vmatprep.subr.mxu0 0.0
        %651 = vmatpush1.msra.mxu0 0.0
        %652 = vmatprep.subr.mxu0 0.0
        %653 = vmatpush1.msra.mxu0 0.0
        %654 = vmatprep.subr.mxu0 0.0
        %655 = vmatpush1.msra.mxu0 0.0
        %656 = vmatprep.subr.mxu0 0.0
        %657 = vmatpush1.msra.mxu0 0.0
        %658 = vmatprep.subr.mxu0 0.0
        %659 = vmatpush1.msra.mxu0 0.0
        %660 = vmatprep.subr.mxu0 0.0
        %661 = vmatpush1.msra.mxu0 0.0
        %662 = vmatprep.subr.mxu0 0.0
        %663 = vmatpush1.msra.mxu0 0.0
        %664 = vmatprep.subr.mxu0 0.0
        %665 = vmatpush1.msra.mxu0 0.0
        %666 = vmatprep.subr.mxu0 0.0
        %667 = vmatpush1.msra.mxu0 0.0
        %668 = vmatprep.subr.mxu0 0.0
        %669 = vmatpush1.msra.mxu0 0.0
        %670 = vmatprep.subr.mxu0 0.0
        %671 = vmatpush1.msra.mxu0 0.0
        %672 = vmatprep.subr.mxu0 0.0
        %673 = vmatpush1.msra.mxu0 0.0
        %674 = vmatprep.subr.mxu0 0.0
        %675 = vmatpush1.msra.mxu0 0.0
        %676 = vmatprep.subr.mxu0 0.0
        %677 = vmatpush1.msra.mxu0 0.0
        %678 = vmatprep.subr.mxu0 0.0
        %679 = vmatpush1.msra.mxu0 0.0
        %680 = vmatprep.subr.mxu0 0.0
        %681 = vmatpush1.msra.mxu0 0.0
        %682 = vmatprep.subr.mxu0 0.0
        %683 = vmatpush1.msra.mxu0 0.0
        %684 = vmatprep.subr.mxu0 0.0
        %685 = vmatpush1.msra.mxu0 0.0
        %686 = vmatprep.mubr.f32.mxu0 0.0
        %687 = vmatmul.mubr.f32.gmra.mrb[0].mxu0 %v620
        %v688 = vpop.f32.mrb[0].mxu0
        %v689 = vadd.f32 0.0, %v688
        %v690 = vpop.f32.mrb[0].mxu0
        %691 = vdwg.mxu0
        %v692 = vld [vmem:[#allocation3] sm:$0xff]
        %v693 = vld [vmem:[#allocation3 + $0x8] sm:$0xff]
        %v694 = vld [vmem:[#allocation3 + $0x10] sm:$0xff]
        %v695 = vld [vmem:[#allocation3 + $0x18] sm:$0xff]
        %v697 = vsel %vm618, %v692, 0
        %v700 = vsel %vm618, %v693, 0
        %v703 = vsel %vm618, %v694, 0
        %v706 = vsel %vm618, %v695, 0
        %708 = vmatprep.subr.mxu0 0.0
        %709 = vmatpush1.msra.mxu0 %v608
        %710 = vmatprep.subr.mxu0 0.0
        %711 = vmatpush1.msra.mxu0 %v609
        %712 = vmatprep.subr.mxu0 0.0
        %713 = vmatpush1.msra.mxu0 %v610
        %714 = vmatprep.subr.mxu0 0.0
        %715 = vmatpush1.msra.mxu0 %v611
        %716 = vmatprep.subr.mxu0 0.0
        %717 = vmatpush1.msra.mxu0 0.0
        %718 = vmatprep.subr.mxu0 0.0
        %719 = vmatpush1.msra.mxu0 0.0
        %720 = vmatprep.subr.mxu0 0.0
        %721 = vmatpush1.msra.mxu0 0.0
        %722 = vmatprep.subr.mxu0 0.0
        %723 = vmatpush1.msra.mxu0 0.0
        %724 = vmatprep.subr.mxu0 0.0
        %725 = vmatpush1.msra.mxu0 0.0
        %726 = vmatprep.subr.mxu0 0.0
        %727 = vmatpush1.msra.mxu0 0.0
        %728 = vmatprep.subr.mxu0 0.0
        %729 = vmatpush1.msra.mxu0 0.0
        %730 = vmatprep.subr.mxu0 0.0
        %731 = vmatpush1.msra.mxu0 0.0
        %732 = vmatprep.subr.mxu0 0.0
        %733 = vmatpush1.msra.mxu0 0.0
        %734 = vmatprep.subr.mxu0 0.0
        %735 = vmatpush1.msra.mxu0 0.0
        %736 = vmatprep.subr.mxu0 0.0
        %737 = vmatpush1.msra.mxu0 0.0
        %738 = vmatprep.subr.mxu0 0.0
        %739 = vmatpush1.msra.mxu0 0.0
        %740 = vmatprep.subr.mxu0 0.0
        %741 = vmatpush1.msra.mxu0 0.0
        %742 = vmatprep.subr.mxu0 0.0
        %743 = vmatpush1.msra.mxu0 0.0
        %744 = vmatprep.subr.mxu0 0.0
        %745 = vmatpush1.msra.mxu0 0.0
        %746 = vmatprep.subr.mxu0 0.0
        %747 = vmatpush1.msra.mxu0 0.0
        %748 = vmatprep.subr.mxu0 0.0
        %749 = vmatpush1.msra.mxu0 0.0
        %750 = vmatprep.subr.mxu0 0.0
        %751 = vmatpush1.msra.mxu0 0.0
        %752 = vmatprep.subr.mxu0 0.0
        %753 = vmatpush1.msra.mxu0 0.0
        %754 = vmatprep.subr.mxu0 0.0
        %755 = vmatpush1.msra.mxu0 0.0
        %756 = vmatprep.subr.mxu0 0.0
        %757 = vmatpush1.msra.mxu0 0.0
        %758 = vmatprep.subr.mxu0 0.0
        %759 = vmatpush1.msra.mxu0 0.0
        %760 = vmatprep.subr.mxu0 0.0
        %761 = vmatpush1.msra.mxu0 0.0
        %762 = vmatprep.subr.mxu0 0.0
        %763 = vmatpush1.msra.mxu0 0.0
        %764 = vmatprep.subr.mxu0 0.0
        %765 = vmatpush1.msra.mxu0 0.0
        %766 = vmatprep.subr.mxu0 0.0
        %767 = vmatpush1.msra.mxu0 0.0
        %768 = vmatprep.subr.mxu0 0.0
        %769 = vmatpush1.msra.mxu0 0.0
        %770 = vmatprep.subr.mxu0 0.0
        %771 = vmatpush1.msra.mxu0 0.0
        %772 = vmatprep.mubr.f32.mxu0 0.0
        %773 = vmatmul.mubr.f32.gmra.mrb[0].mxu0 %v697
        %v774 = vpop.f32.mrb[0].mxu0
        %v775 = vadd.f32 0.0, %v774
        %v776 = vpop.f32.mrb[0].mxu0
        %777 = vmatprep.mubr.f32.mxu0 0.0
        %778 = vmatmul.mubr.f32.gmra.mrb[0].mxu0 %v700
        %v779 = vpop.f32.mrb[0].mxu0
        %v780 = vadd.f32 0.0, %v779
        %v781 = vpop.f32.mrb[0].mxu0
        %782 = vmatprep.mubr.f32.mxu0 0.0
        %783 = vmatmul.mubr.f32.gmra.mrb[0].mxu0 %v703
        %v784 = vpop.f32.mrb[0].mxu0
        %v785 = vadd.f32 0.0, %v784
        %v786 = vpop.f32.mrb[0].mxu0
        %787 = vmatprep.mubr.f32.mxu0 0.0
        %788 = vmatmul.mubr.f32.gmra.mrb[0].mxu0 %v706
        %v789 = vpop.f32.mrb[0].mxu0
        %v790 = vadd.f32 0.0, %v789
        %v791 = vpop.f32.mrb[0].mxu0
        %792 = vdwg.mxu0
        %793 = vmatprep.subr.mxu0 0.0
        %794 = vmatpush1.msra.mxu0 %v612
        %795 = vmatprep.subr.mxu0 0.0
        %796 = vmatpush1.msra.mxu0 %v613
        %797 = vmatprep.subr.mxu0 0.0
        %798 = vmatpush1.msra.mxu0 %v614
        %799 = vmatprep.subr.mxu0 0.0
        %800 = vmatpush1.msra.mxu0 %v615
        %801 = vmatprep.subr.mxu0 0.0
        %802 = vmatpush1.msra.mxu0 0.0
        %803 = vmatprep.subr.mxu0 0.0
        %804 = vmatpush1.msra.mxu0 0.0
        %805 = vmatprep.subr.mxu0 0.0
        %806 = vmatpush1.msra.mxu0 0.0
        %807 = vmatprep.subr.mxu0 0.0
        %808 = vmatpush1.msra.mxu0 0.0
        %809 = vmatprep.subr.mxu0 0.0
        %810 = vmatpush1.msra.mxu0 0.0
        %811 = vmatprep.subr.mxu0 0.0
        %812 = vmatpush1.msra.mxu0 0.0
        %813 = vmatprep.subr.mxu0 0.0
        %814 = vmatpush1.msra.mxu0 0.0
        %815 = vmatprep.subr.mxu0 0.0
        %816 = vmatpush1.msra.mxu0 0.0
        %817 = vmatprep.subr.mxu0 0.0
        %818 = vmatpush1.msra.mxu0 0.0
        %819 = vmatprep.subr.mxu0 0.0
        %820 = vmatpush1.msra.mxu0 0.0
        %821 = vmatprep.subr.mxu0 0.0
        %822 = vmatpush1.msra.mxu0 0.0
        %823 = vmatprep.subr.mxu0 0.0
        %824 = vmatpush1.msra.mxu0 0.0
        %825 = vmatprep.subr.mxu0 0.0
        %826 = vmatpush1.msra.mxu0 0.0
        %827 = vmatprep.subr.mxu0 0.0
        %828 = vmatpush1.msra.mxu0 0.0
        %829 = vmatprep.subr.mxu0 0.0
        %830 = vmatpush1.msra.mxu0 0.0
        %831 = vmatprep.subr.mxu0 0.0
        %832 = vmatpush1.msra.mxu0 0.0
        %833 = vmatprep.subr.mxu0 0.0
        %834 = vmatpush1.msra.mxu0 0.0
        %835 = vmatprep.subr.mxu0 0.0
        %836 = vmatpush1.msra.mxu0 0.0
        %837 = vmatprep.subr.mxu0 0.0
        %838 = vmatpush1.msra.mxu0 0.0
        %839 = vmatprep.subr.mxu0 0.0
        %840 = vmatpush1.msra.mxu0 0.0
        %841 = vmatprep.subr.mxu0 0.0
        %842 = vmatpush1.msra.mxu0 0.0
        %843 = vmatprep.subr.mxu0 0.0
        %844 = vmatpush1.msra.mxu0 0.0
        %845 = vmatprep.subr.mxu0 0.0
        %846 = vmatpush1.msra.mxu0 0.0
        %847 = vmatprep.subr.mxu0 0.0
        %848 = vmatpush1.msra.mxu0 0.0
        %849 = vmatprep.subr.mxu0 0.0
        %850 = vmatpush1.msra.mxu0 0.0
        %851 = vmatprep.subr.mxu0 0.0
        %852 = vmatpush1.msra.mxu0 0.0
        %853 = vmatprep.subr.mxu0 0.0
        %854 = vmatpush1.msra.mxu0 0.0
        %855 = vmatprep.subr.mxu0 0.0
        %856 = vmatpush1.msra.mxu0 0.0
        %857 = vmatprep.mubr.f32.mxu0 0.0
        %858 = vmatmul.mubr.f32.gmra.mrb[0].mxu0 %v697
        %v859 = vpop.f32.mrb[0].mxu0
        %v860 = vadd.f32 0.0, %v859
        %v861 = vpop.f32.mrb[0].mxu0
        %862 = vmatprep.mubr.f32.mxu0 0.0
        %863 = vmatmul.mubr.f32.gmra.mrb[0].mxu0 %v700
        %v864 = vpop.f32.mrb[0].mxu0
        %v865 = vadd.f32 0.0, %v864
        %v866 = vpop.f32.mrb[0].mxu0
        %867 = vmatprep.mubr.f32.mxu0 0.0
        %868 = vmatmul.mubr.f32.gmra.mrb[0].mxu0 %v703
        %v869 = vpop.f32.mrb[0].mxu0
        %v870 = vadd.f32 0.0, %v869
        %v871 = vpop.f32.mrb[0].mxu0
        %872 = vmatprep.mubr.f32.mxu0 0.0
        %873 = vmatmul.mubr.f32.gmra.mrb[0].mxu0 %v706
        %v874 = vpop.f32.mrb[0].mxu0
        %v875 = vadd.f32 0.0, %v874
        %v876 = vpop.f32.mrb[0].mxu0
        %877 = vdwg.mxu0
        %vm878 = vcmask 64512
        %v880 = vsel %vm878, %v689, 0
        %v883 = vsel %vm878, %v775, 0
        %v886 = vsel %vm878, %v780, 0
        %888 = vmatprep.subr.mxu0 0.0
        %889 = vmatpush1.xpose.msra.mxu0 %v883
        %890 = vmatprep.subr.mxu0 0.0
        %891 = vmatpush1.xpose.msra.mxu0 %v886
        %892 = vmatprep.subr.mxu0 0.0
        %893 = vmatpush1.xpose.msra.mxu0 0.0
        %894 = vmatprep.subr.mxu0 0.0
        %895 = vmatpush1.xpose.msra.mxu0 0.0
        %896 = vmatprep.subr.mxu0 0.0
        %897 = vmatpush1.xpose.msra.mxu0 0.0
        %898 = vmatprep.subr.mxu0 0.0
        %899 = vmatpush1.xpose.msra.mxu0 0.0
        %900 = vmatprep.subr.mxu0 0.0
        %901 = vmatpush1.xpose.msra.mxu0 0.0
        %902 = vmatprep.subr.mxu0 0.0
        %903 = vmatpush1.xpose.msra.mxu0 0.0
        %904 = vmatprep.subr.mxu0 0.0
        %905 = vmatpush1.xpose.msra.mxu0 0.0
        %906 = vmatprep.subr.mxu0 0.0
        %907 = vmatpush1.xpose.msra.mxu0 0.0
        %908 = vmatprep.subr.mxu0 0.0
        %909 = vmatpush1.xpose.msra.mxu0 0.0
        %910 = vmatprep.subr.mxu0 0.0
        %911 = vmatpush1.xpose.msra.mxu0 0.0
        %912 = vmatprep.subr.mxu0 0.0
        %913 = vmatpush1.xpose.msra.mxu0 0.0
        %914 = vmatprep.subr.mxu0 0.0
        %915 = vmatpush1.xpose.msra.mxu0 0.0
        %916 = vmatprep.subr.mxu0 0.0
        %917 = vmatpush1.xpose.msra.mxu0 0.0
        %918 = vmatprep.subr.mxu0 0.0
        %919 = vmatpush1.xpose.msra.mxu0 0.0
        %920 = vmatprep.subr.mxu0 0.0
        %921 = vmatpush1.xpose.msra.mxu0 0.0
        %922 = vmatprep.subr.mxu0 0.0
        %923 = vmatpush1.xpose.msra.mxu0 0.0
        %924 = vmatprep.subr.mxu0 0.0
        %925 = vmatpush1.xpose.msra.mxu0 0.0
        %926 = vmatprep.subr.mxu0 0.0
        %927 = vmatpush1.xpose.msra.mxu0 0.0
        %928 = vmatprep.subr.mxu0 0.0
        %929 = vmatpush1.xpose.msra.mxu0 0.0
        %930 = vmatprep.subr.mxu0 0.0
        %931 = vmatpush1.xpose.msra.mxu0 0.0
        %932 = vmatprep.subr.mxu0 0.0
        %933 = vmatpush1.xpose.msra.mxu0 0.0
        %934 = vmatprep.subr.mxu0 0.0
        %935 = vmatpush1.xpose.msra.mxu0 0.0
        %936 = vmatprep.subr.mxu0 0.0
        %937 = vmatpush1.xpose.msra.mxu0 0.0
        %938 = vmatprep.subr.mxu0 0.0
        %939 = vmatpush1.xpose.msra.mxu0 0.0
        %940 = vmatprep.subr.mxu0 0.0
        %941 = vmatpush1.xpose.msra.mxu0 0.0
        %942 = vmatprep.subr.mxu0 0.0
        %943 = vmatpush1.xpose.msra.mxu0 0.0
        %944 = vmatprep.subr.mxu0 0.0
        %945 = vmatpush1.xpose.msra.mxu0 0.0
        %946 = vmatprep.subr.mxu0 0.0
        %947 = vmatpush1.xpose.msra.mxu0 0.0
        %948 = vmatprep.subr.mxu0 0.0
        %949 = vmatpush1.xpose.msra.mxu0 0.0
        %950 = vmatprep.subr.mxu0 0.0
        %951 = vmatpush1.xpose.msra.mxu0 0.0
        %952 = vmatprep.mubr.f32.mxu0 0.0
        %953 = vmatmul.mubr.f32.gmra.mrb[0].mxu0 %v880
        %v954 = vpop.f32.mrb[0].mxu0
        %v955 = vadd.f32 0.0, %v954
        %v956 = vpop.f32.mrb[0].mxu0
        %957 = vdwg.mxu0
        %v959 = vsel %vm878, %v785, 0
        %v962 = vsel %vm878, %v790, 0
        %964 = vmatprep.subr.mxu0 0.0
        %965 = vmatpush1.xpose.msra.mxu0 %v959
        %966 = vmatprep.subr.mxu0 0.0
        %967 = vmatpush1.xpose.msra.mxu0 %v962
        %968 = vmatprep.subr.mxu0 0.0
        %969 = vmatpush1.xpose.msra.mxu0 0.0
        %970 = vmatprep.subr.mxu0 0.0
        %971 = vmatpush1.xpose.msra.mxu0 0.0
        %972 = vmatprep.subr.mxu0 0.0
        %973 = vmatpush1.xpose.msra.mxu0 0.0
        %974 = vmatprep.subr.mxu0 0.0
        %975 = vmatpush1.xpose.msra.mxu0 0.0
        %976 = vmatprep.subr.mxu0 0.0
        %977 = vmatpush1.xpose.msra.mxu0 0.0
        %978 = vmatprep.subr.mxu0 0.0
        %979 = vmatpush1.xpose.msra.mxu0 0.0
        %980 = vmatprep.subr.mxu0 0.0
        %981 = vmatpush1.xpose.msra.mxu0 0.0
        %982 = vmatprep.subr.mxu0 0.0
        %983 = vmatpush1.xpose.msra.mxu0 0.0
        %984 = vmatprep.subr.mxu0 0.0
        %985 = vmatpush1.xpose.msra.mxu0 0.0
        %986 = vmatprep.subr.mxu0 0.0
        %987 = vmatpush1.xpose.msra.mxu0 0.0
        %988 = vmatprep.subr.mxu0 0.0
        %989 = vmatpush1.xpose.msra.mxu0 0.0
        %990 = vmatprep.subr.mxu0 0.0
        %991 = vmatpush1.xpose.msra.mxu0 0.0
        %992 = vmatprep.subr.mxu0 0.0
        %993 = vmatpush1.xpose.msra.mxu0 0.0
        %994 = vmatprep.subr.mxu0 0.0
        %995 = vmatpush1.xpose.msra.mxu0 0.0
        %996 = vmatprep.subr.mxu0 0.0
        %997 = vmatpush1.xpose.msra.mxu0 0.0
        %998 = vmatprep.subr.mxu0 0.0
        %999 = vmatpush1.xpose.msra.mxu0 0.0
        %1000 = vmatprep.subr.mxu0 0.0
        %1001 = vmatpush1.xpose.msra.mxu0 0.0
        %1002 = vmatprep.subr.mxu0 0.0
        %1003 = vmatpush1.xpose.msra.mxu0 0.0
        %1004 = vmatprep.subr.mxu0 0.0
        %1005 = vmatpush1.xpose.msra.mxu0 0.0
        %1006 = vmatprep.subr.mxu0 0.0
        %1007 = vmatpush1.xpose.msra.mxu0 0.0
        %1008 = vmatprep.subr.mxu0 0.0
        %1009 = vmatpush1.xpose.msra.mxu0 0.0
        %1010 = vmatprep.subr.mxu0 0.0
        %1011 = vmatpush1.xpose.msra.mxu0 0.0
        %1012 = vmatprep.subr.mxu0 0.0
        %1013 = vmatpush1.xpose.msra.mxu0 0.0
        %1014 = vmatprep.subr.mxu0 0.0
        %1015 = vmatpush1.xpose.msra.mxu0 0.0
        %1016 = vmatprep.subr.mxu0 0.0
        %1017 = vmatpush1.xpose.msra.mxu0 0.0
        %1018 = vmatprep.subr.mxu0 0.0
        %1019 = vmatpush1.xpose.msra.mxu0 0.0
        %1020 = vmatprep.subr.mxu0 0.0
        %1021 = vmatpush1.xpose.msra.mxu0 0.0
        %1022 = vmatprep.subr.mxu0 0.0
        %1023 = vmatpush1.xpose.msra.mxu0 0.0
        %1024 = vmatprep.subr.mxu0 0.0
        %1025 = vmatpush1.xpose.msra.mxu0 0.0
        %1026 = vmatprep.subr.mxu0 0.0
        %1027 = vmatpush1.xpose.msra.mxu0 0.0
        %1028 = vmatprep.mubr.f32.mxu0 0.0
        %1029 = vmatmul.mubr.f32.gmra.mrb[0].mxu0 %v880
        %v1030 = vpop.f32.mrb[0].mxu0
        %v1031 = vadd.f32 0.0, %v1030
        %v1032 = vpop.f32.mrb[0].mxu0
        %1033 = vdwg.mxu0
        %v1034 = vmul.f32 %v955, 0.35355338
        %v1035 = vmul.f32 %v1031, 0.35355338
        %vm1036 = vcmask 130048
        %v1037 = vsel %vm1036, %v1034, -inf
        %1038 = vmax.xlane.f32.xlu0 %v1037
        %v1039 = vpop.xlane.xlu0 %1038
        %v1040 = vsel %vm1036, %v1035, -inf
        %1041 = vmax.xlane.f32.xlu0 %v1040
        %v1042 = vpop.xlane.xlu0 %1041
        %v1043 = vsub.f32 %v1034, %v1039
        %v1044 = vsub.f32 %v1035, %v1042
        %v1045 = vmul.f32 %v1043, 1.442695
        %v1046 = vpow.pop %v1045
        %v1047 = vmul.f32 %v1044, 1.442695
        %v1048 = vpow.pop %v1047
        %v1049 = vsel %vm1036, %v1046, 0.0
        %1050 = vadd.xlane.f32.xlu0 %v1049
        %v1051 = vpop.xlane.xlu0 %1050
        %v1052 = vsel %vm1036, %v1048, 0.0
        %1053 = vadd.xlane.f32.xlu0 %v1052
        %v1054 = vpop.xlane.xlu0 %1053
        %v1056 = vsel %vm1036, %v1046, 0
        %1058 = vmatprep.subr.mxu0 0.0
        %1059 = vmatpush1.msra.mxu0 %v860
        %1060 = vmatprep.subr.mxu0 0.0
        %1061 = vmatpush1.msra.mxu0 %v865
        %1062 = vmatprep.subr.mxu0 0.0
        %1063 = vmatpush1.msra.mxu0 0.0
        %1064 = vmatprep.subr.mxu0 0.0
        %1065 = vmatpush1.msra.mxu0 0.0
        %1066 = vmatprep.subr.mxu0 0.0
        %1067 = vmatpush1.msra.mxu0 0.0
        %1068 = vmatprep.subr.mxu0 0.0
        %1069 = vmatpush1.msra.mxu0 0.0
        %1070 = vmatprep.subr.mxu0 0.0
        %1071 = vmatpush1.msra.mxu0 0.0
        %1072 = vmatprep.subr.mxu0 0.0
        %1073 = vmatpush1.msra.mxu0 0.0
        %1074 = vmatprep.subr.mxu0 0.0
        %1075 = vmatpush1.msra.mxu0 0.0
        %1076 = vmatprep.subr.mxu0 0.0
        %1077 = vmatpush1.msra.mxu0 0.0
        %1078 = vmatprep.subr.mxu0 0.0
        %1079 = vmatpush1.msra.mxu0 0.0
        %1080 = vmatprep.subr.mxu0 0.0
        %1081 = vmatpush1.msra.mxu0 0.0
        %1082 = vmatprep.subr.mxu0 0.0
        %1083 = vmatpush1.msra.mxu0 0.0
        %1084 = vmatprep.subr.mxu0 0.0
        %1085 = vmatpush1.msra.mxu0 0.0
        %1086 = vmatprep.subr.mxu0 0.0
        %1087 = vmatpush1.msra.mxu0 0.0
        %1088 = vmatprep.subr.mxu0 0.0
        %1089 = vmatpush1.msra.mxu0 0.0
        %1090 = vmatprep.subr.mxu0 0.0
        %1091 = vmatpush1.msra.mxu0 0.0
        %1092 = vmatprep.subr.mxu0 0.0
        %1093 = vmatpush1.msra.mxu0 0.0
        %1094 = vmatprep.subr.mxu0 0.0
        %1095 = vmatpush1.msra.mxu0 0.0
        %1096 = vmatprep.subr.mxu0 0.0
        %1097 = vmatpush1.msra.mxu0 0.0
        %1098 = vmatprep.subr.mxu0 0.0
        %1099 = vmatpush1.msra.mxu0 0.0
        %1100 = vmatprep.subr.mxu0 0.0
        %1101 = vmatpush1.msra.mxu0 0.0
        %1102 = vmatprep.subr.mxu0 0.0
        %1103 = vmatpush1.msra.mxu0 0.0
        %1104 = vmatprep.subr.mxu0 0.0
        %1105 = vmatpush1.msra.mxu0 0.0
        %1106 = vmatprep.subr.mxu0 0.0
        %1107 = vmatpush1.msra.mxu0 0.0
        %1108 = vmatprep.subr.mxu0 0.0
        %1109 = vmatpush1.msra.mxu0 0.0
        %1110 = vmatprep.subr.mxu0 0.0
        %1111 = vmatpush1.msra.mxu0 0.0
        %1112 = vmatprep.subr.mxu0 0.0
        %1113 = vmatpush1.msra.mxu0 0.0
        %1114 = vmatprep.subr.mxu0 0.0
        %1115 = vmatpush1.msra.mxu0 0.0
        %1116 = vmatprep.subr.mxu0 0.0
        %1117 = vmatpush1.msra.mxu0 0.0
        %1118 = vmatprep.subr.mxu0 0.0
        %1119 = vmatpush1.msra.mxu0 0.0
        %1120 = vmatprep.subr.mxu0 0.0
        %1121 = vmatpush1.msra.mxu0 0.0
        %1122 = vmatprep.mubr.f32.mxu0 0.0
        %1123 = vmatmul.mubr.f32.gmra.mrb[0].mxu0 %v1056
        %v1124 = vpop.f32.mrb[0].mxu0
        %v1125 = vadd.f32 0.0, %v1124
        %v1126 = vpop.f32.mrb[0].mxu0
        %1127 = vdwg.mxu0
        %v1129 = vsel %vm1036, %v1048, 0
        %1131 = vmatprep.subr.mxu0 0.0
        %1132 = vmatpush1.msra.mxu0 %v870
        %1133 = vmatprep.subr.mxu0 0.0
        %1134 = vmatpush1.msra.mxu0 %v875
        %1135 = vmatprep.subr.mxu0 0.0
        %1136 = vmatpush1.msra.mxu0 0.0
        %1137 = vmatprep.subr.mxu0 0.0
        %1138 = vmatpush1.msra.mxu0 0.0
        %1139 = vmatprep.subr.mxu0 0.0
        %1140 = vmatpush1.msra.mxu0 0.0
        %1141 = vmatprep.subr.mxu0 0.0
        %1142 = vmatpush1.msra.mxu0 0.0
        %1143 = vmatprep.subr.mxu0 0.0
        %1144 = vmatpush1.msra.mxu0 0.0
        %1145 = vmatprep.subr.mxu0 0.0
        %1146 = vmatpush1.msra.mxu0 0.0
        %1147 = vmatprep.subr.mxu0 0.0
        %1148 = vmatpush1.msra.mxu0 0.0
        %1149 = vmatprep.subr.mxu0 0.0
        %1150 = vmatpush1.msra.mxu0 0.0
        %1151 = vmatprep.subr.mxu0 0.0
        %1152 = vmatpush1.msra.mxu0 0.0
        %1153 = vmatprep.subr.mxu0 0.0
        %1154 = vmatpush1.msra.mxu0 0.0
        %1155 = vmatprep.subr.mxu0 0.0
        %1156 = vmatpush1.msra.mxu0 0.0
        %1157 = vmatprep.subr.mxu0 0.0
        %1158 = vmatpush1.msra.mxu0 0.0
        %1159 = vmatprep.subr.mxu0 0.0
        %1160 = vmatpush1.msra.mxu0 0.0
        %1161 = vmatprep.subr.mxu0 0.0
        %1162 = vmatpush1.msra.mxu0 0.0
        %1163 = vmatprep.subr.mxu0 0.0
        %1164 = vmatpush1.msra.mxu0 0.0
        %1165 = vmatprep.subr.mxu0 0.0
        %1166 = vmatpush1.msra.mxu0 0.0
        %1167 = vmatprep.subr.mxu0 0.0
        %1168 = vmatpush1.msra.mxu0 0.0
        %1169 = vmatprep.subr.mxu0 0.0
        %1170 = vmatpush1.msra.mxu0 0.0
        %1171 = vmatprep.subr.mxu0 0.0
        %1172 = vmatpush1.msra.mxu0 0.0
        %1173 = vmatprep.subr.mxu0 0.0
        %1174 = vmatpush1.msra.mxu0 0.0
        %1175 = vmatprep.subr.mxu0 0.0
        %1176 = vmatpush1.msra.mxu0 0.0
        %1177 = vmatprep.subr.mxu0 0.0
        %1178 = vmatpush1.msra.mxu0 0.0
        %1179 = vmatprep.subr.mxu0 0.0
        %1180 = vmatpush1.msra.mxu0 0.0
        %1181 = vmatprep.subr.mxu0 0.0
        %1182 = vmatpush1.msra.mxu0 0.0
        %1183 = vmatprep.subr.mxu0 0.0
        %1184 = vmatpush1.msra.mxu0 0.0
        %1185 = vmatprep.subr.mxu0 0.0
        %1186 = vmatpush1.msra.mxu0 0.0
        %1187 = vmatprep.subr.mxu0 0.0
        %1188 = vmatpush1.msra.mxu0 0.0
        %1189 = vmatprep.subr.mxu0 0.0
        %1190 = vmatpush1.msra.mxu0 0.0
        %1191 = vmatprep.subr.mxu0 0.0
        %1192 = vmatpush1.msra.mxu0 0.0
        %1193 = vmatprep.subr.mxu0 0.0
        %1194 = vmatpush1.msra.mxu0 0.0
        %1195 = vmatprep.mubr.f32.mxu0 0.0
        %1196 = vmatmul.mubr.f32.gmra.mrb[0].mxu0 %v1129
        %v1197 = vpop.f32.mrb[0].mxu0
        %v1198 = vadd.f32 0.0, %v1197
        %v1199 = vpop.f32.mrb[0].mxu0
        %1200 = vdwg.mxu0
        %v1201 = vrcp.pop %v1051
        %v1202 = vrcp.pop %v1054
        %v1203 = vmul.f32 %v1125, %v1201
        %v1204 = vmul.f32 %v1198, %v1202
        %v1205 = vld [vmem:[#allocation4] sm:$0xff]
        %v1206 = vld [vmem:[#allocation4 + $0x8] sm:$0xff]
        %v1208 = vsel %vm878, %v1203, 0
        %v1211 = vsel %vm878, %v1204, 0
        %1213 = vmatprep.subr.mxu0 0.0
        %1214 = vmatpush1.msra.mxu0 %v616
        %1215 = vmatprep.subr.mxu0 0.0
        %1216 = vmatpush1.msra.mxu0 0.0
        %1217 = vmatprep.subr.mxu0 0.0
        %1218 = vmatpush1.msra.mxu0 0.0
        %1219 = vmatprep.subr.mxu0 0.0
        %1220 = vmatpush1.msra.mxu0 0.0
        %1221 = vmatprep.subr.mxu0 0.0
        %1222 = vmatpush1.msra.mxu0 0.0
        %1223 = vmatprep.subr.mxu0 0.0
        %1224 = vmatpush1.msra.mxu0 0.0
        %1225 = vmatprep.subr.mxu0 0.0
        %1226 = vmatpush1.msra.mxu0 0.0
        %1227 = vmatprep.subr.mxu0 0.0
        %1228 = vmatpush1.msra.mxu0 0.0
        %1229 = vmatprep.subr.mxu0 0.0
        %1230 = vmatpush1.msra.mxu0 0.0
        %1231 = vmatprep.subr.mxu0 0.0
        %1232 = vmatpush1.msra.mxu0 0.0
        %1233 = vmatprep.subr.mxu0 0.0
        %1234 = vmatpush1.msra.mxu0 0.0
        %1235 = vmatprep.subr.mxu0 0.0
        %1236 = vmatpush1.msra.mxu0 0.0
        %1237 = vmatprep.subr.mxu0 0.0
        %1238 = vmatpush1.msra.mxu0 0.0
        %1239 = vmatprep.subr.mxu0 0.0
        %1240 = vmatpush1.msra.mxu0 0.0
        %1241 = vmatprep.subr.mxu0 0.0
        %1242 = vmatpush1.msra.mxu0 0.0
        %1243 = vmatprep.subr.mxu0 0.0
        %1244 = vmatpush1.msra.mxu0 0.0
        %1245 = vmatprep.subr.mxu0 0.0
        %1246 = vmatpush1.msra.mxu0 0.0
        %1247 = vmatprep.subr.mxu0 0.0
        %1248 = vmatpush1.msra.mxu0 0.0
        %1249 = vmatprep.subr.mxu0 0.0
        %1250 = vmatpush1.msra.mxu0 0.0
        %1251 = vmatprep.subr.mxu0 0.0
        %1252 = vmatpush1.msra.mxu0 0.0
        %1253 = vmatprep.subr.mxu0 0.0
        %1254 = vmatpush1.msra.mxu0 0.0
        %1255 = vmatprep.subr.mxu0 0.0
        %1256 = vmatpush1.msra.mxu0 0.0
        %1257 = vmatprep.subr.mxu0 0.0
        %1258 = vmatpush1.msra.mxu0 0.0
        %1259 = vmatprep.subr.mxu0 0.0
        %1260 = vmatpush1.msra.mxu0 0.0
        %1261 = vmatprep.subr.mxu0 0.0
        %1262 = vmatpush1.msra.mxu0 0.0
        %1263 = vmatprep.subr.mxu0 0.0
        %1264 = vmatpush1.msra.mxu0 0.0
        %1265 = vmatprep.subr.mxu0 0.0
        %1266 = vmatpush1.msra.mxu0 0.0
        %1267 = vmatprep.subr.mxu0 0.0
        %1268 = vmatpush1.msra.mxu0 0.0
        %1269 = vmatprep.subr.mxu0 0.0
        %1270 = vmatpush1.msra.mxu0 0.0
        %1271 = vmatprep.subr.mxu0 0.0
        %1272 = vmatpush1.msra.mxu0 0.0
        %1273 = vmatprep.subr.mxu0 0.0
        %1274 = vmatpush1.msra.mxu0 0.0
        %1275 = vmatprep.subr.mxu0 0.0
        %1276 = vmatpush1.msra.mxu0 0.0
        %1277 = vmatprep.mubr.f32.mxu0 0.0
        %1278 = vmatmul.mubr.f32.gmra.mrb[0].mxu0 %v1208
        %v1279 = vpop.f32.mrb[0].mxu0
        %v1280 = vadd.f32 0.0, %v1279
        %v1281 = vpop.f32.mrb[0].mxu0
        %1282 = vmatprep.mubr.f32.mxu0 0.0
        %1283 = vmatmul.mubr.f32.gmra.mrb[0].mxu0 %v1211
        %v1284 = vpop.f32.mrb[0].mxu0
        %v1285 = vadd.f32 0.0, %v1284
        %v1286 = vpop.f32.mrb[0].mxu0
        %1287 = vdwg.mxu0
        %v1288 = vadd.f32 %v1205, %v1280
        %v1289 = vadd.f32 %v1206, %v1285
        %1290 = vst.msk [vmem:[#allocation4] sm:$0xff] %vm618, %v1288
        %1291 = vst.msk [vmem:[#allocation4 + $0x8] sm:$0xff] %vm618, %v1289
        %p1292 = scmp.eq.s32.totalorder %s28, 3
        // Predicated region
        $region69: #{tpu_custom_call.1} parent=63 // pred_check
          %p1293 = pneg %p1292
        $region70: #{tpu_custom_call.1} parent=63 // pred_check_branch
          %1295 = sbr.rel (%p1293) target = $region72
        $region71: #{tpu_custom_call.1} parent=63 // pred_region
          %v1296 = vld [vmem:[#allocation4] sm:$0xff]
          %v1297 = vld [vmem:[#allocation4 + $0x8] sm:$0xff]
          %v1298 = vld [vmem:[%s6] sm:$0x1]
          %v1300 = vlaneseq
          %v1301 = vshrl.u32 %v1300, 7
          %v1302 = vsub.s32 0, %v1301
          %v1303 = vrot.slane %v1298, %v1302
          %v1305 = vadd.f32 %v1296, %v1303
          %v1306 = vadd.f32 %v1297, %v1303
          %v1307 = vld [vmem:[%s0] sm:$0xff]
          %v1308 = vadd.f32 %v1305, %v1307
          %v1309 = vadd.f32 %v1306, %v1307
          %1310 = vst.msk [vmem:[#allocation5] sm:$0xff] %vm618, %v1308
          %1311 = vst.msk [vmem:[#allocation5 + $0x8] sm:$0xff] %vm618, %v1309
        $region72: #{tpu_custom_call.1} parent=63 // pred_fallthru
          _
        // Predicated region
        $region73: #{tpu_custom_call.1} parent=63 // pred_check
          %p1312 = pneg %p309
        $region74: #{tpu_custom_call.1} parent=63 // pred_check_branch
          %1314 = sbr.rel (%p1312) target = $region76
        $region75: #{tpu_custom_call.1} parent=63 // pred_region
          %s1315 = smul.u32 2, %s27
          %s1317 = ssub.s32 256, 256
          %1318 = vsyncadd [#allocation6], %s1317
          %s1319 = smul.addr %s1315, 128
          %s1320 = scalar_lea.hbm %s11, %s1319
          %s1321 = sshll.u32 [#allocation5], 4
          %s1322 = int_to_ptr.vmem [resolvable:$true] %s1321
          %1327 = dma.vmem_to_hbm [thread:$0]  %s1322, 256, %s1320, [#allocation6], 128, 128, 8
        $region76: #{tpu_custom_call.1} parent=63 // pred_fallthru
          _
        // Predicated region
        $region77: #{tpu_custom_call.1} parent=63 // pred_check
          %p1328 = pneg %p309
        $region78: #{tpu_custom_call.1} parent=63 // pred_check_branch
          %1330 = sbr.rel (%p1328) target = $region80
        $region79: #{tpu_custom_call.1} parent=63 // pred_region
          %1331 = dma.done [#allocation6], 256
        $region80: #{tpu_custom_call.1} parent=63 // pred_fallthru
          _
      $region64: #{tpu_custom_call.1} parent=5 // pred_fallthru
        _
      %p1332 = scmp.le.s32.totalorder 2, %s18
      // Predicated region
      $region81: #{tpu_custom_call.1} parent=5 // pred_check
        %p1333 = pneg %p1332
      $region82: #{tpu_custom_call.1} parent=5 // pred_check_branch
        %1335 = sbr.rel (%p1333) target = $region84
      $region83: #{tpu_custom_call.1} parent=5 // pred_region
        %s1336 = ssub.s32 %s18, 2
      $region84: #{tpu_custom_call.1} parent=5 // pred_fallthru
        _
    $region6: #{tpu_custom_call.1} parent=1 // loop_footer
      %s22 = sadd.s32 1, %s18
    $region7: #{tpu_custom_call.1} parent=1 // loop_footer_branch
      %17 = sbr.rel target = $region3
    $region8: #{tpu_custom_call.1} parent=1 // loop_exit
      _
    %1337 = vsyncpa [#allocation6], 1
    %s1338 = scalar_lea.sflag [#allocation6], 1
    %1339 = vsyncpa %s1338, 1

</llo_original>
